<compile_context>
chip_gen: v7x
topology: tpu7x:2x2x1
jax: 0.10.0
libtpu: 0.0.40
codegen_flags: <defaults>
</compile_context>

<pallas_src>
import functools

import jax
import jax.numpy as jnp
from jax.experimental import pallas as pl
from jax.experimental.pallas import tpu as pltpu

_BN_EPS = 1e-5
# Safe scoped-VMEM limit on every generation (v5e/v6e: 128 MiB physical,
# v7x: 64 MiB physical). tile_pts=2048 needs ~13 MiB, so this has headroom.
_VMEM_LIMIT_BYTES = 48 * 1024 * 1024


# ----------------------------------------------------------------------------
# Kernel
# ----------------------------------------------------------------------------
def _pointwise_conv1(x, w):
    """1x1 conv with tiny K (= channel) as VPU broadcast-FMAs (no K=3 matmul)."""
    c_in = x.shape[1]
    h = x[:, 0:1] * w[0:1, :]
    for c in range(1, c_in):
        h = h + x[:, c:c + 1] * w[c:c + 1, :]
    return h


def _pointnet_max_kernel(x_ref, w1_ref, b1_ref, w2_ref, b2_ref, w3_ref,
                         out_ref, acc_ref, *, valid_tail):
    """Per-point conv1->conv2->conv3 and running channel-wise max.

    grid = (B, num_point_tiles).  Output block index is constant along the
    point-tile axis ('arbitrary', innermost), so the output block stays
    resident across tiles and is only written under pl.when(t == last);
    changing the grid order or out index_map would break that invariant.

    conv3 bias / ReLU are intentionally NOT applied here — they commute with
    the max and are applied to the (B, 1024) result in the wrapper.
    """
    t = pl.program_id(1)
    num_t = pl.num_programs(1)

    x = x_ref[0]                                           # (tile_pts, C) f32
    w1 = w1_ref[0]                                         # (C, 64), per-batch

    # conv1 + bn1 + relu  (BN — and for the encoder the 3x3 transform — folded
    # into w1/b1).
    h = jnp.maximum(_pointwise_conv1(x, w1) + b1_ref[...], 0.0)

    # conv2 + bn2 + relu  (bf16 matmul, f32 accumulate).
    h = jnp.dot(h.astype(w2_ref.dtype), w2_ref[...],
                preferred_element_type=jnp.float32) + b2_ref[...]
    h = jnp.maximum(h, 0.0)

    # conv3 raw MXU output (bias + optional ReLU deferred past the max).
    h = jnp.dot(h.astype(w3_ref.dtype), w3_ref[...],
                preferred_element_type=jnp.float32)        # (tile_pts, 1024)

    if valid_tail is not None:
        # Ragged N: zero-padded rows live only in the last tile; mask them so
        # they never win the max.
        rows = jax.lax.broadcasted_iota(jnp.int32, h.shape, 0)
        keep = jnp.logical_or(t != num_t - 1, rows < valid_tail)
        h = jnp.where(keep, h, -jnp.inf)

    @pl.when(t == 0)
    def _():
        # -inf (not 0): conv3 raw output can be negative (no ReLU applied yet).
        acc_ref[...] = jnp.full(acc_ref.shape, -jnp.inf, acc_ref.dtype)

    # Pure-VPU partial reduction into an (8, C_out) accumulator; the final
    # 8 -> 1 sublane collapse only happens once, on the last tile.
    tp, cout = h.shape
    part = jnp.max(h.reshape(tp // 8, 8, cout), axis=0)    # (8, 1024)
    acc_ref[...] = jnp.maximum(acc_ref[...], part)

    @pl.when(t == num_t - 1)
    def _():
        out_ref[...] = jnp.max(acc_ref[...], axis=0,
                               keepdims=True).reshape(out_ref.shape)


# ----------------------------------------------------------------------------
# Wrappers
# ----------------------------------------------------------------------------
def _resident_spec(a):
    # Constant index_map for every grid step -> weight stays resident in VMEM
    # (DMA'd once); only the x point-tile is streamed / double-buffered.
    nd = a.ndim
    return pl.BlockSpec(a.shape, lambda b, t, _nd=nd: (0,) * _nd)


def _bn_fold(lin, bn, eps=_BN_EPS):
    """Fold eval-mode BatchNorm into the preceding 1x1-conv / linear layer."""
    scale = bn["gamma"] / jnp.sqrt(bn["var"] + eps)
    shift = bn["beta"] - bn["mean"] * scale
    return lin["w"] * scale, lin["b"] * scale + shift


def _round_up(n, m):
    return ((n + m - 1) // m) * m


def _conv_stack_max(x_bnc, w1_per_batch, b1, w2, b2, w3, *, tile_pts):
    """Run the shared trunk kernel: returns raw max_n(conv3(...)) of shape (B, 1024)."""
    B, N, C = x_bnc.shape
    cout = w3.shape[1]

    # Tile sizing: multiple of 8 sublanes, at most the (rounded-up) point count.
    tile = max(8, min(tile_pts, _round_up(N, 8)))
    tile = (tile // 8) * 8
    num_t = -(-N // tile)
    n_pad = num_t * tile

    valid_tail = None
    if n_pad != N:
        valid_tail = N - (num_t - 1) * tile     # valid rows in the last tile
        x_bnc = jnp.pad(x_bnc, ((0, 0), (0, n_pad - N), (0, 0)))

    kernel = functools.partial(_pointnet_max_kernel, valid_tail=valid_tail)
    resident = [b1, w2, b2, w3]

    out = pl.pallas_call(
        kernel,
        out_shape=jax.ShapeDtypeStruct((B, 1, cout), jnp.float32),
        grid_spec=pltpu.PrefetchScalarGridSpec(
            num_scalar_prefetch=0,
            grid=(B, num_t),
            in_specs=[pl.BlockSpec((1, tile, C), lambda b, t: (b, t, 0)),
                      pl.BlockSpec((1, C, 64), lambda b, t: (b, 0, 0))]
                     + [_resident_spec(a) for a in resident],
            out_specs=pl.BlockSpec((1, 1, cout), lambda b, t: (b, 0, 0)),
            scratch_shapes=[pltpu.VMEM((8, cout), jnp.float32)]),
        compiler_params=pltpu.CompilerParams(
            dimension_semantics=("parallel", "arbitrary"),
            vmem_limit_bytes=_VMEM_LIMIT_BYTES),
    )(x_bnc, w1_per_batch, *resident)
    return out.reshape(B, cout)


def stn3d_forward(x_bnc, p, *, tile_pts, matmul_dtype=jnp.bfloat16):
    """STN3d. x_bnc: (B, N, C) point-major. Returns the (B, 3, 3) transform."""
    B, _, C = x_bnc.shape

    w1, b1 = _bn_fold(p["conv1"], p["bn1"])
    w2, b2 = _bn_fold(p["conv2"], p["bn2"])
    w3, b3 = _bn_fold(p["conv3"], p["bn3"])

    g = _conv_stack_max(
        x_bnc, jnp.broadcast_to(w1[None], (B,) + w1.shape), b1,
        w2.astype(matmul_dtype), b2, w3.astype(matmul_dtype),
        tile_pts=tile_pts)                                   # (B, 1024) raw

    # Deferred conv3 bias + ReLU (commute with the max).
    g = jnp.maximum(g + b3, 0.0)

    # fc1/fc2/fc3 epilogue: once per batch element, tiny -> plain XLA (keeps
    # the FC weights out of the kernel's resident VMEM footprint).
    wf1, bf1 = _bn_fold(p["fc1"], p["bn4"])
    wf2, bf2 = _bn_fold(p["fc2"], p["bn5"])
    g = jax.nn.relu(g @ wf1 + bf1)
    g = jax.nn.relu(g @ wf2 + bf2)
    g = g @ p["fc3"]["w"] + p["fc3"]["b"] + jnp.eye(3, dtype=jnp.float32).reshape(1, 9)
    return g.reshape(B, 3, 3)


@functools.partial(jax.jit, static_argnames=("tile_pts",))
def pointnet_encoder_forward(x_ncw, params, *, tile_pts=1024):
    """PointNetEncoder(global_feat=True, feature_transform=False) forward.

    x_ncw: (B, C, N) float32 (PyTorch Conv1d layout). Returns (B, 1024).
    tile_pts: point-tile size; 1024 is a good default everywhere (2048+ also
    fits comfortably on v6e). Non-multiple N is handled via -inf tail masking.
    """
    B, C, N = x_ncw.shape
    assert C == 3, "TODO(synk): D>3 feature-passthrough path not implemented"

    # Layout glue once, outside the kernels: point-major, channels on lanes.
    x = jnp.transpose(x_ncw, (0, 2, 1))                    # (B, N, C)

    # Spatial transformer.
    trans = stn3d_forward(x, params["stn"], tile_pts=tile_pts)   # (B, 3, 3)

    # Fold the input transform into conv1: (x @ trans) @ W1 == x @ (trans @ W1).
    w1, b1 = _bn_fold(params["conv1"], params["bn1"])      # (3, 64), (1, 64)
    w1_eff = jnp.einsum("bij,jk->bik", trans, w1)          # (B, 3, 64)
    w2, b2 = _bn_fold(params["conv2"], params["bn2"])
    w3, b3 = _bn_fold(params["conv3"], params["bn3"])

    g = _conv_stack_max(x, w1_eff, b1,
                        w2.astype(jnp.bfloat16), b2, w3.astype(jnp.bfloat16),
                        tile_pts=tile_pts)                 # (B, 1024) raw max
    # Deferred conv3 bias; NO ReLU here (matches the module).
    return g + b3


# ----------------------------------------------------------------------------
# Deterministic synthetic parameters (no checkpoint).
# ----------------------------------------------------------------------------
def _make_linear(key, cin, cout):
    kw, kb = jax.random.split(key)
    return {"w": jax.random.normal(kw, (cin, cout), jnp.float32) / jnp.sqrt(float(cin)),
            "b": 0.1 * jax.random.normal(kb, (1, cout), jnp.float32)}


def _make_bn(key, c):
    kg, kb, km, kv = jax.random.split(key, 4)
    return {"gamma": 1.0 + 0.1 * jax.random.normal(kg, (1, c), jnp.float32),
            "beta": 0.1 * jax.random.normal(kb, (1, c), jnp.float32),
            "mean": 0.1 * jax.random.normal(km, (1, c), jnp.float32),
            "var": jax.random.uniform(kv, (1, c), jnp.float32, 0.5, 1.5)}


def make_stn3d_params(key, channel):
    keys = jax.random.split(key, 11)
    return {
        "conv1": _make_linear(keys[0], channel, 64), "bn1": _make_bn(keys[1], 64),
        "conv2": _make_linear(keys[2], 64, 128),     "bn2": _make_bn(keys[3], 128),
        "conv3": _make_linear(keys[4], 128, 1024),   "bn3": _make_bn(keys[5], 1024),
        "fc1": _make_linear(keys[6], 1024, 512),     "bn4": _make_bn(keys[7], 512),
        "fc2": _make_linear(keys[8], 512, 256),      "bn5": _make_bn(keys[9], 256),
        "fc3": _make_linear(keys[10], 256, 9),
    }


def make_encoder_params(key, channel=3):
    keys = jax.random.split(key, 7)
    return {
        "stn": make_stn3d_params(keys[0], channel),
        "conv1": _make_linear(keys[1], channel, 64), "bn1": _make_bn(keys[2], 64),
        "conv2": _make_linear(keys[3], 64, 128),     "bn2": _make_bn(keys[4], 128),
        "conv3": _make_linear(keys[5], 128, 1024),   "bn3": _make_bn(keys[6], 1024),
    }


# ----------------------------------------------------------------------------
# Pure-JAX f32 references (eval-mode BN, unfolded) for correctness checking.
# ----------------------------------------------------------------------------
def _bn_ref(h, bn, eps=_BN_EPS):
    return (h - bn["mean"]) / jnp.sqrt(bn["var"] + eps) * bn["gamma"] + bn["beta"]


def stn3d_reference(x_bnc, p):
    B = x_bnc.shape[0]
    h = jax.nn.relu(_bn_ref(x_bnc @ p["conv1"]["w"] + p["conv1"]["b"], p["bn1"]))
    h = jax.nn.relu(_bn_ref(h @ p["conv2"]["w"] + p["conv2"]["b"], p["bn2"]))
    h = jax.nn.relu(_bn_ref(h @ p["conv3"]["w"] + p["conv3"]["b"], p["bn3"]))
    h = jnp.max(h, axis=1)                                 # (B, 1024)
    h = jax.nn.relu(_bn_ref(h @ p["fc1"]["w"] + p["fc1"]["b"], p["bn4"]))
    h = jax.nn.relu(_bn_ref(h @ p["fc2"]["w"] + p["fc2"]["b"], p["bn5"]))
    h = h @ p["fc3"]["w"] + p["fc3"]["b"] + jnp.eye(3, dtype=jnp.float32).reshape(1, 9)
    return h.reshape(B, 3, 3)


def pointnet_encoder_reference(x_ncw, params):
    x = jnp.transpose(x_ncw, (0, 2, 1))                    # (B, N, C)
    trans = stn3d_reference(x, params["stn"])
    x = jnp.einsum("bnc,bcd->bnd", x, trans)
    h = jax.nn.relu(_bn_ref(x @ params["conv1"]["w"] + params["conv1"]["b"], params["bn1"]))
    h = jax.nn.relu(_bn_ref(h @ params["conv2"]["w"] + params["conv2"]["b"], params["bn2"]))
    h = _bn_ref(h @ params["conv3"]["w"] + params["conv3"]["b"], params["bn3"])
    return jnp.max(h, axis=1)                              # (B, 1024)


if __name__ == "__main__":
    key = jax.random.PRNGKey(0)
    # Small PointNet input: (batch, channel, num_points). N=250 with tile_pts=96
    # exercises multi-tile running-max accumulation AND the ragged-tail masking
    # path (250 = 2*96 + 58).
    B, C, N = 2, 3, 250
    tile_pts = 96
    kx, kp = jax.random.split(key)
    x = jax.random.normal(kx, (B, C, N), jnp.float32)
    params = make_encoder_params(kp, C)

    feat = pointnet_encoder_forward(x, params, tile_pts=tile_pts)
    feat = jax.block_until_ready(feat)

    ref = pointnet_encoder_reference(x, params)
    assert feat.shape == (B, 1024)
    # conv2/conv3 matmuls run in bf16 (f32 accumulation) -> loosened tolerance
    # vs the pure-f32 reference.
    assert jnp.allclose(feat, ref, atol=3e-2, rtol=3e-2), "mismatch vs reference"

    print("KERNEL_OK")
</pallas_src>

<mosaic_0001>
module attributes {stable_mosaic.version = 11 : i64} {
  func.func @_pointnet_max_kernel(%arg0: i32, %arg1: i32, %arg2: memref<1x96x3xf32, #tpu.memory_space<vmem>>, %arg3: memref<1x3x64xf32, #tpu.memory_space<vmem>>, %arg4: memref<1x64xf32, #tpu.memory_space<vmem>>, %arg5: memref<64x128xbf16, #tpu.memory_space<vmem>>, %arg6: memref<1x128xf32, #tpu.memory_space<vmem>>, %arg7: memref<128x1024xbf16, #tpu.memory_space<vmem>>, %arg8: memref<1x1x1024xf32, #tpu.memory_space<vmem>>, %arg9: memref<8x1024xf32, #tpu.memory_space<vmem>>) attributes {dimension_semantics = [#tpu.dimension_semantics<parallel>, #tpu.dimension_semantics<arbitrary>], iteration_bounds = array<i64: 2, 3>, scalar_prefetch = 0 : i64, scratch_operands = 1 : i64, tpu.core_type = #tpu.core_type<tc>, window_params = [{transform_indices = @transform_0, window_bounds = array<i64: 1, 96, 3>}, {transform_indices = @transform_1, window_bounds = array<i64: 1, 3, 64>}, {pipeline_mode = #tpu.pipeline_mode<synchronous>, transform_indices = @transform_2, window_bounds = array<i64: 1, 64>}, {pipeline_mode = #tpu.pipeline_mode<synchronous>, transform_indices = @transform_3, window_bounds = array<i64: 64, 128>}, {pipeline_mode = #tpu.pipeline_mode<synchronous>, transform_indices = @transform_4, window_bounds = array<i64: 1, 128>}, {pipeline_mode = #tpu.pipeline_mode<synchronous>, transform_indices = @transform_5, window_bounds = array<i64: 128, 1024>}, {transform_indices = @transform_6, window_bounds = array<i64: 1, 1, 1024>}]} {
    %c0 = arith.constant 0 : index
    %c0_0 = arith.constant 0 : index
    %c0_1 = arith.constant 0 : index
    %0 = vector.load %arg2[%c0, %c0_0, %c0_1] : memref<1x96x3xf32, #tpu.memory_space<vmem>>, vector<1x96x3xf32>
    %1 = vector.shape_cast %0 : vector<1x96x3xf32> to vector<96x3xf32>
    %c0_2 = arith.constant 0 : index
    %c0_3 = arith.constant 0 : index
    %c0_4 = arith.constant 0 : index
    %2 = vector.load %arg3[%c0_2, %c0_3, %c0_4] : memref<1x3x64xf32, #tpu.memory_space<vmem>>, vector<1x3x64xf32>
    %3 = vector.shape_cast %2 : vector<1x3x64xf32> to vector<3x64xf32>
    %4 = vector.extract_strided_slice %1 {offsets = [0, 0], sizes = [96, 1], strides = [1, 1]} : vector<96x3xf32> to vector<96x1xf32>
    %5 = vector.extract_strided_slice %3 {offsets = [0, 0], sizes = [1, 64], strides = [1, 1]} : vector<3x64xf32> to vector<1x64xf32>
    %6 = vector.broadcast %4 : vector<96x1xf32> to vector<96x64xf32>
    %7 = vector.broadcast %5 : vector<1x64xf32> to vector<96x64xf32>
    %8 = arith.mulf %6, %7 : vector<96x64xf32>
    %9 = vector.extract_strided_slice %1 {offsets = [0, 1], sizes = [96, 1], strides = [1, 1]} : vector<96x3xf32> to vector<96x1xf32>
    %10 = vector.extract_strided_slice %3 {offsets = [1, 0], sizes = [1, 64], strides = [1, 1]} : vector<3x64xf32> to vector<1x64xf32>
    %11 = vector.broadcast %9 : vector<96x1xf32> to vector<96x64xf32>
    %12 = vector.broadcast %10 : vector<1x64xf32> to vector<96x64xf32>
    %13 = arith.mulf %11, %12 : vector<96x64xf32>
    %14 = arith.addf %8, %13 : vector<96x64xf32>
    %15 = vector.extract_strided_slice %1 {offsets = [0, 2], sizes = [96, 1], strides = [1, 1]} : vector<96x3xf32> to vector<96x1xf32>
    %16 = vector.extract_strided_slice %3 {offsets = [2, 0], sizes = [1, 64], strides = [1, 1]} : vector<3x64xf32> to vector<1x64xf32>
    %17 = vector.broadcast %15 : vector<96x1xf32> to vector<96x64xf32>
    %18 = vector.broadcast %16 : vector<1x64xf32> to vector<96x64xf32>
    %19 = arith.mulf %17, %18 : vector<96x64xf32>
    %20 = arith.addf %14, %19 : vector<96x64xf32>
    %c0_5 = arith.constant 0 : index
    %c0_6 = arith.constant 0 : index
    %21 = vector.load %arg4[%c0_5, %c0_6] : memref<1x64xf32, #tpu.memory_space<vmem>>, vector<1x64xf32>
    %22 = vector.broadcast %21 : vector<1x64xf32> to vector<96x64xf32>
    %23 = arith.addf %20, %22 : vector<96x64xf32>
    %cst = arith.constant 0.000000e+00 : f32
    %24 = vector.broadcast %cst : f32 to vector<96x64xf32>
    %25 = arith.maximumf %23, %24 : vector<96x64xf32>
    %26 = arith.truncf %25 : vector<96x64xf32> to vector<96x64xbf16>
    %c0_7 = arith.constant 0 : index
    %c0_8 = arith.constant 0 : index
    %27 = vector.load %arg5[%c0_7, %c0_8] : memref<64x128xbf16, #tpu.memory_space<vmem>>, vector<64x128xbf16>
    %cst_9 = arith.constant dense<0.000000e+00> : vector<96x128xf32>
    %28 = tpu.matmul %26, %27, %cst_9 {dimension_numbers = #tpu.dot_dimension_numbers<[1], [0], [0], [1], [0, 0, 1, 1], [], []>} : vector<96x64xbf16>, vector<64x128xbf16>, vector<96x128xf32> -> vector<96x128xf32>
    %c0_10 = arith.constant 0 : index
    %c0_11 = arith.constant 0 : index
    %29 = vector.load %arg6[%c0_10, %c0_11] : memref<1x128xf32, #tpu.memory_space<vmem>>, vector<1x128xf32>
    %30 = vector.broadcast %29 : vector<1x128xf32> to vector<96x128xf32>
    %31 = arith.addf %28, %30 : vector<96x128xf32>
    %cst_12 = arith.constant 0.000000e+00 : f32
    %32 = vector.broadcast %cst_12 : f32 to vector<96x128xf32>
    %33 = arith.maximumf %31, %32 : vector<96x128xf32>
    %34 = arith.truncf %33 : vector<96x128xf32> to vector<96x128xbf16>
    %c0_13 = arith.constant 0 : index
    %c0_14 = arith.constant 0 : index
    %35 = vector.load %arg7[%c0_13, %c0_14] : memref<128x1024xbf16, #tpu.memory_space<vmem>>, vector<128x1024xbf16>
    %cst_15 = arith.constant dense<0.000000e+00> : vector<96x1024xf32>
    %36 = tpu.matmul %34, %35, %cst_15 {dimension_numbers = #tpu.dot_dimension_numbers<[1], [0], [0], [1], [0, 0, 1, 1], [], []>} : vector<96x128xbf16>, vector<128x1024xbf16>, vector<96x1024xf32> -> vector<96x1024xf32>
    %37 = tpu.iota {dimensions = array<i32: 0>} : vector<96x1024xi32>
    %c2_i32 = arith.constant 2 : i32
    %38 = arith.cmpi ne, %arg1, %c2_i32 : i32
    %c58_i32 = arith.constant 58 : i32
    %39 = vector.broadcast %c58_i32 : i32 to vector<96x1024xi32>
    %40 = arith.cmpi slt, %37, %39 : vector<96x1024xi32>
    %41 = vector.broadcast %38 : i1 to vector<96x1024xi1>
    %42 = arith.ori %41, %40 : vector<96x1024xi1>
    %cst_16 = arith.constant 0xFF800000 : f32
    %43 = vector.broadcast %cst_16 : f32 to vector<96x1024xf32>
    %44 = arith.select %42, %36, %43 : vector<96x1024xi1>, vector<96x1024xf32>
    %c0_i32 = arith.constant 0 : i32
    %45 = arith.cmpi eq, %arg1, %c0_i32 : i32
    %46 = arith.extui %45 : i1 to i32
    %c0_i32_17 = arith.constant 0 : i32
    %47 = arith.cmpi ne, %46, %c0_i32_17 : i32
    scf.if %47 {
      %cst_25 = arith.constant 0xFF800000 : f32
      %56 = vector.broadcast %cst_25 : f32 to vector<8x1024xf32>
      %c0_26 = arith.constant 0 : index
      %c0_27 = arith.constant 0 : index
      %57 = vector.load %arg9[%c0_26, %c0_27] : memref<8x1024xf32, #tpu.memory_space<vmem>>, vector<8x1024xf32>
      tpu.vector_store %arg9[%c0_26, %c0_27], %56 {strides = array<i32>} : memref<8x1024xf32, #tpu.memory_space<vmem>>, vector<8x1024xf32>,
    } else {
    }
    %48 = vector.shape_cast %44 : vector<96x1024xf32> to vector<12x8x1024xf32>
    %cst_18 = arith.constant dense<0xFF800000> : vector<8x1024xf32>
    %49 = vector.multi_reduction <maximumf>, %48, %cst_18 [0] : vector<12x8x1024xf32> to vector<8x1024xf32>
    %c0_19 = arith.constant 0 : index
    %c0_20 = arith.constant 0 : index
    %50 = vector.load %arg9[%c0_19, %c0_20] : memref<8x1024xf32, #tpu.memory_space<vmem>>, vector<8x1024xf32>
    %51 = arith.maximumf %50, %49 : vector<8x1024xf32>
    %c0_21 = arith.constant 0 : index
    %c0_22 = arith.constant 0 : index
    %52 = vector.load %arg9[%c0_21, %c0_22] : memref<8x1024xf32, #tpu.memory_space<vmem>>, vector<8x1024xf32>
    tpu.vector_store %arg9[%c0_21, %c0_22], %51 {strides = array<i32>} : memref<8x1024xf32, #tpu.memory_space<vmem>>, vector<8x1024xf32>,
    %c2_i32_23 = arith.constant 2 : i32
    %53 = arith.cmpi eq, %arg1, %c2_i32_23 : i32
    %54 = arith.extui %53 : i1 to i32
    %c0_i32_24 = arith.constant 0 : i32
    %55 = arith.cmpi ne, %54, %c0_i32_24 : i32
    scf.if %55 {
      %c0_25 = arith.constant 0 : index
      %c0_26 = arith.constant 0 : index
      %56 = vector.load %arg9[%c0_25, %c0_26] : memref<8x1024xf32, #tpu.memory_space<vmem>>, vector<8x1024xf32>
      %cst_27 = arith.constant dense<0xFF800000> : vector<1024xf32>
      %57 = vector.multi_reduction <maximumf>, %56, %cst_27 [0] : vector<8x1024xf32> to vector<1024xf32>
      %58 = vector.shape_cast %57 : vector<1024xf32> to vector<1x1024xf32>
      %59 = vector.shape_cast %58 : vector<1x1024xf32> to vector<1x1x1024xf32>
      %c0_28 = arith.constant 0 : index
      %c0_29 = arith.constant 0 : index
      %c0_30 = arith.constant 0 : index
      %60 = vector.load %arg8[%c0_28, %c0_29, %c0_30] : memref<1x1x1024xf32, #tpu.memory_space<vmem>>, vector<1x1x1024xf32>
      tpu.vector_store %arg8[%c0_28, %c0_29, %c0_30], %59 {strides = array<i32>} : memref<1x1x1024xf32, #tpu.memory_space<vmem>>, vector<1x1x1024xf32>,
    } else {
    }
    return
  }
  func.func @transform_0(%arg0: i32, %arg1: i32) -> (i32, i32, i32) {
    %c0_i32 = arith.constant 0 : i32
    %c0_i32_0 = arith.constant 0 : i32
    return %arg0, %arg1, %c0_i32 : i32, i32, i32
  }
  func.func @transform_1(%arg0: i32, %arg1: i32) -> (i32, i32, i32) {
    %c0_i32 = arith.constant 0 : i32
    %c0_i32_0 = arith.constant 0 : i32
    %c0_i32_1 = arith.constant 0 : i32
    return %arg0, %c0_i32, %c0_i32_0 : i32, i32, i32
  }
  func.func @transform_2(%arg0: i32, %arg1: i32) -> (i32, i32) {
    %c0_i32 = arith.constant 0 : i32
    %c0_i32_0 = arith.constant 0 : i32
    %c0_i32_1 = arith.constant 0 : i32
    return %c0_i32, %c0_i32_0 : i32, i32
  }
  func.func @transform_3(%arg0: i32, %arg1: i32) -> (i32, i32) {
    %c0_i32 = arith.constant 0 : i32
    %c0_i32_0 = arith.constant 0 : i32
    %c0_i32_1 = arith.constant 0 : i32
    return %c0_i32, %c0_i32_0 : i32, i32
  }
  func.func @transform_4(%arg0: i32, %arg1: i32) -> (i32, i32) {
    %c0_i32 = arith.constant 0 : i32
    %c0_i32_0 = arith.constant 0 : i32
    %c0_i32_1 = arith.constant 0 : i32
    return %c0_i32, %c0_i32_0 : i32, i32
  }
  func.func @transform_5(%arg0: i32, %arg1: i32) -> (i32, i32) {
    %c0_i32 = arith.constant 0 : i32
    %c0_i32_0 = arith.constant 0 : i32
    %c0_i32_1 = arith.constant 0 : i32
    return %c0_i32, %c0_i32_0 : i32, i32
  }
  func.func @transform_6(%arg0: i32, %arg1: i32) -> (i32, i32, i32) {
    %c0_i32 = arith.constant 0 : i32
    %c0_i32_0 = arith.constant 0 : i32
    %c0_i32_1 = arith.constant 0 : i32
    return %arg0, %c0_i32, %c0_i32_0 : i32, i32, i32
  }
}

</mosaic_0001>

<llo_original>
// kernel: pointnet_encoder_forward.2
$region0: #{pointnet_encoder_forward.2}
  #allocation0 [shape = 'u32[]', space=smem, size = 0x4, offset = 0x4, fixed_abs, tag = 'smem constant byte address 0x4 - core index']
  #allocation1 [shape = 'u32[144,128]{1,0:T(1,128)}', space=vmem, size = 0x12000, scoped, tag = 'internal scratch']
  #allocation2 [shape = 'f32[8,1024]{1,0:T(8,128)}', space=vmem, size = 0x8000, scoped, tag = 'scratch operand']
  %s0 = inlined_call_operand.vmem [shape: f32[2,288,3], index: 0, kind: input, shape index: {}]
  %s1 = inlined_call_operand.vmem [shape: f32[2,3,64], index: 1, kind: input, shape index: {}]
  %s2 = inlined_call_operand.vmem [shape: f32[1,64], index: 2, kind: input, shape index: {}]
  %s3 = inlined_call_operand.vmem [shape: bf16[64,128], index: 3, kind: input, shape index: {}]
  %s4 = inlined_call_operand.vmem [shape: f32[1,128], index: 4, kind: input, shape index: {}]
  %s5 = inlined_call_operand.vmem [shape: bf16[128,1024], index: 5, kind: input, shape index: {}]
  %s6 = inlined_call_operand.vmem [shape: f32[2,1,1024], index: 6, kind: output, shape index: {}]
  %s7 = sld [smem:[#allocation0]]
  $region65: #{pointnet_encoder_forward.2} parent=0
    _
  %s9 = ssub.s32 1, %s7
  %s10 = scalar_select 0, %s9, %s7
  loop: start=0, step=1, limit=8
  $region2: #{pointnet_encoder_forward.2} parent=0 // loop_pre_header
    _
  $region3: #{pointnet_encoder_forward.2} parent=0 // loop_header
    %s12 = sphi 0, %s16
    %p13 = scmp.ge.s32.totalorder %s12, 8
    %s19 = sphi 0, %s31
    %s20 = sphi 0, %s27
    %s21 = sphi 0, %s19
    %s22 = sphi 0, %s20
    %s23 = sphi 0, %s21
    %s24 = sphi 0, %s22
    %s36 = sphi 0, %s38
    %s39 = sphi 0, %s36
    %s40 = sphi 0, %s39
    %s56 = sphi 0, %s40
    %s62 = sphi 0, %s64
    %s65 = sphi 0, %s62
    %s66 = sphi 0, %s65
    %s82 = sphi 0, %s66
    %s86 = sphi 0, %s86
    %s88 = sphi 0, %s86
    %s89 = sphi 0, %s88
    %s103 = sphi 0, %s89
    %s107 = sphi 0, %s107
    %s109 = sphi 0, %s107
    %s110 = sphi 0, %s109
    %s124 = sphi 0, %s110
    %s128 = sphi 0, %s128
    %s130 = sphi 0, %s128
    %s131 = sphi 0, %s130
    %s145 = sphi 0, %s131
    %s149 = sphi 0, %s149
    %s151 = sphi 0, %s149
    %s152 = sphi 0, %s151
    %s166 = sphi 0, %s152
    %s172 = sphi 0, %s174
    %s175 = sphi 0, %s172
    %s176 = sphi 0, %s175
    %s192 = sphi 0, %s176
  $region4: #{pointnet_encoder_forward.2} parent=0 // loop_header_branch
    %15 = sbr.rel (%p13) target = $region8
  $region5: #{pointnet_encoder_forward.2} parent=0 // loop_body
    %s17 = ssub.s32 %s12, 1
    %s18 = ssub.s32 %s12, 2
    %s25 = sadd.s32 1, %s20
    %p26 = scmp.ge.s32.totalorder %s25, 3
    %s27 = scalar_select %p26, 0, %s25
    %s28 = sadd.s32 1, %s19
    %s29 = scalar_select %p26, %s28, %s19
    %p30 = scmp.ge.s32.totalorder %s29, 2
    %s31 = scalar_select %p30, 0, %s29
    %s32 = ssub.s32 %s19, %s31
    %s33 = ssub.s32 %s20, %s27
    %s34 = sor.u32 %s32, %s33
    %p35 = scmp.eq.s32.totalorder %s34, 0
    %s37 = sadd.s32 %s36, 1
    %s38 = scalar_select %p35, %s36, %s37
    %p41 = pneg %p35
    %p42 = scmp.eq.s32.totalorder %s12, 5
    %p43 = por %p41, %p42
    %p44 = scmp.ne.s32.totalorder %s36, %s39
    %p45 = scmp.eq.s32.totalorder %s12, 0
    %p46 = por %p44, %p45
    %p47 = scmp.ne.s32.totalorder %s36, %s39
    %p48 = scmp.eq.s32.totalorder %s17, 5
    %p49 = por %p47, %p48
    %p50 = scmp.ne.s32.totalorder %s39, %s40
    %p51 = scmp.eq.s32.totalorder %s17, 0
    %p52 = por %p50, %p51
    %p53 = scmp.ne.s32.totalorder %s39, %s40
    %p54 = scmp.eq.s32.totalorder %s18, 5
    %p55 = por %p53, %p54
    %p57 = scmp.ne.s32.totalorder %s40, %s56
    %p58 = scmp.eq.s32.totalorder %s18, 0
    %p59 = por %p57, %p58
    %s60 = ssub.s32 %s19, %s31
    %p61 = scmp.eq.s32.totalorder %s60, 0
    %s63 = sadd.s32 %s62, 1
    %s64 = scalar_select %p61, %s62, %s63
    %p67 = pneg %p61
    %p68 = scmp.eq.s32.totalorder %s12, 5
    %p69 = por %p67, %p68
    %p70 = scmp.ne.s32.totalorder %s62, %s65
    %p71 = scmp.eq.s32.totalorder %s12, 0
    %p72 = por %p70, %p71
    %p73 = scmp.ne.s32.totalorder %s62, %s65
    %p74 = scmp.eq.s32.totalorder %s17, 5
    %p75 = por %p73, %p74
    %p76 = scmp.ne.s32.totalorder %s65, %s66
    %p77 = scmp.eq.s32.totalorder %s17, 0
    %p78 = por %p76, %p77
    %p79 = scmp.ne.s32.totalorder %s65, %s66
    %p80 = scmp.eq.s32.totalorder %s18, 5
    %p81 = por %p79, %p80
    %p83 = scmp.ne.s32.totalorder %s66, %s82
    %p84 = scmp.eq.s32.totalorder %s18, 0
    %p85 = por %p83, %p84
    %s87 = sadd.s32 %s86, 1
    %p90 = scmp.eq.s32.totalorder %s12, 5
    %p91 = scmp.ne.s32.totalorder %s86, %s88
    %p92 = scmp.eq.s32.totalorder %s12, 0
    %p93 = por %p91, %p92
    %p94 = scmp.ne.s32.totalorder %s86, %s88
    %p95 = scmp.eq.s32.totalorder %s17, 5
    %p96 = por %p94, %p95
    %p97 = scmp.ne.s32.totalorder %s88, %s89
    %p98 = scmp.eq.s32.totalorder %s17, 0
    %p99 = por %p97, %p98
    %p100 = scmp.ne.s32.totalorder %s88, %s89
    %p101 = scmp.eq.s32.totalorder %s18, 5
    %p102 = por %p100, %p101
    %p104 = scmp.ne.s32.totalorder %s89, %s103
    %p105 = scmp.eq.s32.totalorder %s18, 0
    %p106 = por %p104, %p105
    %s108 = sadd.s32 %s107, 1
    %p111 = scmp.eq.s32.totalorder %s12, 5
    %p112 = scmp.ne.s32.totalorder %s107, %s109
    %p113 = scmp.eq.s32.totalorder %s12, 0
    %p114 = por %p112, %p113
    %p115 = scmp.ne.s32.totalorder %s107, %s109
    %p116 = scmp.eq.s32.totalorder %s17, 5
    %p117 = por %p115, %p116
    %p118 = scmp.ne.s32.totalorder %s109, %s110
    %p119 = scmp.eq.s32.totalorder %s17, 0
    %p120 = por %p118, %p119
    %p121 = scmp.ne.s32.totalorder %s109, %s110
    %p122 = scmp.eq.s32.totalorder %s18, 5
    %p123 = por %p121, %p122
    %p125 = scmp.ne.s32.totalorder %s110, %s124
    %p126 = scmp.eq.s32.totalorder %s18, 0
    %p127 = por %p125, %p126
    %s129 = sadd.s32 %s128, 1
    %p132 = scmp.eq.s32.totalorder %s12, 5
    %p133 = scmp.ne.s32.totalorder %s128, %s130
    %p134 = scmp.eq.s32.totalorder %s12, 0
    %p135 = por %p133, %p134
    %p136 = scmp.ne.s32.totalorder %s128, %s130
    %p137 = scmp.eq.s32.totalorder %s17, 5
    %p138 = por %p136, %p137
    %p139 = scmp.ne.s32.totalorder %s130, %s131
    %p140 = scmp.eq.s32.totalorder %s17, 0
    %p141 = por %p139, %p140
    %p142 = scmp.ne.s32.totalorder %s130, %s131
    %p143 = scmp.eq.s32.totalorder %s18, 5
    %p144 = por %p142, %p143
    %p146 = scmp.ne.s32.totalorder %s131, %s145
    %p147 = scmp.eq.s32.totalorder %s18, 0
    %p148 = por %p146, %p147
    %s150 = sadd.s32 %s149, 1
    %p153 = scmp.eq.s32.totalorder %s12, 5
    %p154 = scmp.ne.s32.totalorder %s149, %s151
    %p155 = scmp.eq.s32.totalorder %s12, 0
    %p156 = por %p154, %p155
    %p157 = scmp.ne.s32.totalorder %s149, %s151
    %p158 = scmp.eq.s32.totalorder %s17, 5
    %p159 = por %p157, %p158
    %p160 = scmp.ne.s32.totalorder %s151, %s152
    %p161 = scmp.eq.s32.totalorder %s17, 0
    %p162 = por %p160, %p161
    %p163 = scmp.ne.s32.totalorder %s151, %s152
    %p164 = scmp.eq.s32.totalorder %s18, 5
    %p165 = por %p163, %p164
    %p167 = scmp.ne.s32.totalorder %s152, %s166
    %p168 = scmp.eq.s32.totalorder %s18, 0
    %p169 = por %p167, %p168
    %s170 = ssub.s32 %s19, %s31
    %p171 = scmp.eq.s32.totalorder %s170, 0
    %s173 = sadd.s32 %s172, 1
    %s174 = scalar_select %p171, %s172, %s173
    %p177 = pneg %p171
    %p178 = scmp.eq.s32.totalorder %s12, 5
    %p179 = por %p177, %p178
    %p180 = scmp.ne.s32.totalorder %s172, %s175
    %p181 = scmp.eq.s32.totalorder %s12, 0
    %p182 = por %p180, %p181
    %p183 = scmp.ne.s32.totalorder %s172, %s175
    %p184 = scmp.eq.s32.totalorder %s17, 5
    %p185 = por %p183, %p184
    %p186 = scmp.ne.s32.totalorder %s175, %s176
    %p187 = scmp.eq.s32.totalorder %s17, 0
    %p188 = por %p186, %p187
    %p189 = scmp.ne.s32.totalorder %s175, %s176
    %p190 = scmp.eq.s32.totalorder %s18, 5
    %p191 = por %p189, %p190
    %p193 = scmp.ne.s32.totalorder %s176, %s192
    %p194 = scmp.eq.s32.totalorder %s18, 0
    %p195 = por %p193, %p194
    %p196 = scmp.le.s32.totalorder 1, %s12
    %p197 = scmp.lt.s32.totalorder %s12, 7
    %p198 = pnand %p196, %p197
    %p199 = pneg %p198
    // Predicated region
    $region9: #{pointnet_encoder_forward.2} parent=5 // pred_check
      _
    $region10: #{pointnet_encoder_forward.2} parent=5 // pred_check_branch
      %201 = sbr.rel (%p198) target = $region12
    $region11: #{pointnet_encoder_forward.2} parent=5 // pred_region
      %s202 = ssub.s32 %s12, 1
      // Predicated region
      $region13: #{pointnet_encoder_forward.2} parent=11 // pred_check
        %p203 = pneg %p99
      $region14: #{pointnet_encoder_forward.2} parent=11 // pred_check_branch
        %205 = sbr.rel (%p203) target = $region16
      $region15: #{pointnet_encoder_forward.2} parent=11 // pred_region
        _
      $region16: #{pointnet_encoder_forward.2} parent=11 // pred_fallthru
        _
      // Predicated region
      $region17: #{pointnet_encoder_forward.2} parent=11 // pred_check
        %p206 = pneg %p120
      $region18: #{pointnet_encoder_forward.2} parent=11 // pred_check_branch
        %208 = sbr.rel (%p206) target = $region20
      $region19: #{pointnet_encoder_forward.2} parent=11 // pred_region
        _
      $region20: #{pointnet_encoder_forward.2} parent=11 // pred_fallthru
        _
      // Predicated region
      $region21: #{pointnet_encoder_forward.2} parent=11 // pred_check
        %p209 = pneg %p141
      $region22: #{pointnet_encoder_forward.2} parent=11 // pred_check_branch
        %211 = sbr.rel (%p209) target = $region24
      $region23: #{pointnet_encoder_forward.2} parent=11 // pred_region
        _
      $region24: #{pointnet_encoder_forward.2} parent=11 // pred_fallthru
        _
      // Predicated region
      $region25: #{pointnet_encoder_forward.2} parent=11 // pred_check
        %p212 = pneg %p162
      $region26: #{pointnet_encoder_forward.2} parent=11 // pred_check_branch
        %214 = sbr.rel (%p212) target = $region28
      $region27: #{pointnet_encoder_forward.2} parent=11 // pred_region
        _
      $region28: #{pointnet_encoder_forward.2} parent=11 // pred_fallthru
        _
    $region12: #{pointnet_encoder_forward.2} parent=5 // pred_fallthru
      _
    %p215 = scmp.lt.s32.totalorder %s12, 6
    // Predicated region
    $region29: #{pointnet_encoder_forward.2} parent=5 // pred_check
      %p216 = pneg %p215
    $region30: #{pointnet_encoder_forward.2} parent=5 // pred_check_branch
      %218 = sbr.rel (%p216) target = $region32
    $region31: #{pointnet_encoder_forward.2} parent=5 // pred_region
      // Predicated region
      $region33: #{pointnet_encoder_forward.2} parent=31 // pred_check
        %p219 = pneg %p46
      $region34: #{pointnet_encoder_forward.2} parent=31 // pred_check_branch
        %221 = sbr.rel (%p219) target = $region36
      $region35: #{pointnet_encoder_forward.2} parent=31 // pred_region
        %s222 = smul.u32 12, %s20
        %p223 = scmp.lt.s32.totalorder %s19, 1
        %s224 = scalar_select %p223, %s19, 1
        %p225 = scmp.lt.s32.totalorder %s222, 35
        %s226 = scalar_select %p225, %s222, 35
        %s227 = smul.addr %s224, 36
        %s228 = sadd.s32 %s226, %s227
        %s229 = smul.addr %s228, 8
        %s230 = scalar_lea.vmem %s0, %s229
        %s231 = smul.u32 12, %s20
      $region36: #{pointnet_encoder_forward.2} parent=31 // pred_fallthru
        _
      // Predicated region
      $region37: #{pointnet_encoder_forward.2} parent=31 // pred_check
        %p232 = pneg %p72
      $region38: #{pointnet_encoder_forward.2} parent=31 // pred_check_branch
        %234 = sbr.rel (%p232) target = $region40
      $region39: #{pointnet_encoder_forward.2} parent=31 // pred_region
        %p235 = scmp.lt.s32.totalorder %s19, 1
        %s236 = scalar_select %p235, %s19, 1
        %s237 = smul.addr %s236, 4
        %s238 = scalar_lea.vmem %s1, %s237
      $region40: #{pointnet_encoder_forward.2} parent=31 // pred_fallthru
        _
    $region32: #{pointnet_encoder_forward.2} parent=5 // pred_fallthru
      _
    %p239 = scmp.le.s32.totalorder 1, %s12
    %p240 = scmp.lt.s32.totalorder %s12, 7
    %p241 = pnand %p239, %p240
    %p242 = pneg %p241
    // Predicated region
    $region41: #{pointnet_encoder_forward.2} parent=5 // pred_check
      _
    $region42: #{pointnet_encoder_forward.2} parent=5 // pred_check_branch
      %244 = sbr.rel (%p241) target = $region44
    $region43: #{pointnet_encoder_forward.2} parent=5 // pred_region
      %s245 = ssub.s32 %s12, 1
      %s246 = smul.u32 12, %s22
      %p247 = scmp.lt.s32.totalorder %s21, 1
      %s248 = scalar_select %p247, %s21, 1
      %p249 = scmp.lt.s32.totalorder %s246, 35
      %s250 = scalar_select %p249, %s246, 35
      %s251 = smul.addr %s248, 36
      %s252 = sadd.s32 %s250, %s251
      %s253 = smul.addr %s252, 8
      %s254 = scalar_lea.vmem %s0, %s253
      %p255 = pneg %p52
      %p256 = pneg %p49
      %p257 = scmp.lt.s32.totalorder %s21, 1
      %s258 = scalar_select %p257, %s21, 1
      %s259 = smul.addr %s258, 4
      %s260 = scalar_lea.vmem %s1, %s259
      %p261 = pneg %p78
      %p262 = pneg %p75
      %p263 = pneg %p99
      %p264 = pneg %p96
      %p265 = pneg %p120
      %p266 = pneg %p117
      %p267 = pneg %p141
      %p268 = pneg %p138
      %p269 = pneg %p162
      %p270 = pneg %p159
      %p271 = pneg %p188
      %p272 = pneg %p185
      %p273 = scmp.lt.s32.totalorder %s21, 1
      %s274 = scalar_select %p273, %s21, 1
      %s275 = smul.addr %s274, 8
      %s276 = scalar_lea.vmem %s6, %s275
      %s277 = smul.u32 12, %s22
      %p278 = scmp.lt.s32.totalorder %s21, 1
      %s279 = scalar_select %p278, %s21, 1
      %p280 = scmp.lt.s32.totalorder %s277, 35
      %s281 = scalar_select %p280, %s277, 35
      %s282 = smul.addr %s279, 36
      %s283 = sadd.s32 %s281, %s282
      %s284 = smul.addr %s283, 8
      %s285 = scalar_lea.vmem %s0, %s284
      %s286 = smul.u32 12, %s22
      %p287 = scmp.lt.s32.totalorder %s21, 1
      %s288 = scalar_select %p287, %s21, 1
      %s289 = smul.addr %s288, 4
      %s290 = scalar_lea.vmem %s1, %s289
      %p291 = scmp.lt.s32.totalorder %s21, 1
      %s292 = scalar_select %p291, %s21, 1
      %s293 = smul.addr %s292, 8
      %s294 = scalar_lea.vmem %s6, %s293
      %v296 = vld [vmem:[%s285] sm:$0xff]
      %v297 = vld [vmem:[%s285 + $0x8] sm:$0xff]
      %v298 = vld [vmem:[%s285 + $0x10] sm:$0xff]
      %v299 = vld [vmem:[%s285 + $0x18] sm:$0xff]
      %v300 = vld [vmem:[%s285 + $0x20] sm:$0xff]
      %v301 = vld [vmem:[%s285 + $0x28] sm:$0xff]
      %v302 = vld [vmem:[%s285 + $0x30] sm:$0xff]
      %v303 = vld [vmem:[%s285 + $0x38] sm:$0xff]
      %v304 = vld [vmem:[%s285 + $0x40] sm:$0xff]
      %v305 = vld [vmem:[%s285 + $0x48] sm:$0xff]
      %v306 = vld [vmem:[%s285 + $0x50] sm:$0xff]
      %v307 = vld [vmem:[%s285 + $0x58] sm:$0xff]
      %v308 = vld [vmem:[%s290] sm:$0x7]
      %310 = vset.pattern.permute.xlu0 0
      %311 = vperm.xlu0 %310, %v296
      %v312 = vpop.permute.xlu0 %311
      %315 = vset.pattern.permute.xlu0 0
      %316 = vperm.xlu0 %315, %v297
      %v317 = vpop.permute.xlu0 %316
      %320 = vset.pattern.permute.xlu0 0
      %321 = vperm.xlu0 %320, %v298
      %v322 = vpop.permute.xlu0 %321
      %325 = vset.pattern.permute.xlu0 0
      %326 = vperm.xlu0 %325, %v299
      %v327 = vpop.permute.xlu0 %326
      %330 = vset.pattern.permute.xlu0 0
      %331 = vperm.xlu0 %330, %v300
      %v332 = vpop.permute.xlu0 %331
      %335 = vset.pattern.permute.xlu0 0
      %336 = vperm.xlu0 %335, %v301
      %v337 = vpop.permute.xlu0 %336
      %340 = vset.pattern.permute.xlu0 0
      %341 = vperm.xlu0 %340, %v302
      %v342 = vpop.permute.xlu0 %341
      %345 = vset.pattern.permute.xlu0 0
      %346 = vperm.xlu0 %345, %v303
      %v347 = vpop.permute.xlu0 %346
      %350 = vset.pattern.permute.xlu0 0
      %351 = vperm.xlu0 %350, %v304
      %v352 = vpop.permute.xlu0 %351
      %355 = vset.pattern.permute.xlu0 0
      %356 = vperm.xlu0 %355, %v305
      %v357 = vpop.permute.xlu0 %356
      %360 = vset.pattern.permute.xlu0 0
      %361 = vperm.xlu0 %360, %v306
      %v362 = vpop.permute.xlu0 %361
      %365 = vset.pattern.permute.xlu0 0
      %366 = vperm.xlu0 %365, %v307
      %v367 = vpop.permute.xlu0 %366
      %v369 = vlaneseq
      %v370 = vshrl.u32 %v369, 7
      %v371 = vsub.s32 0, %v370
      %v372 = vrot.slane %v308, %v371
      %v373 = vmul.f32 %v312, %v372
      %v374 = vmul.f32 %v317, %v372
      %v375 = vmul.f32 %v322, %v372
      %v376 = vmul.f32 %v327, %v372
      %v377 = vmul.f32 %v332, %v372
      %v378 = vmul.f32 %v337, %v372
      %v379 = vmul.f32 %v342, %v372
      %v380 = vmul.f32 %v347, %v372
      %v381 = vmul.f32 %v352, %v372
      %v382 = vmul.f32 %v357, %v372
      %v383 = vmul.f32 %v362, %v372
      %v384 = vmul.f32 %v367, %v372
      %385 = vset.pattern.permute.xlu0 1
      %386 = vperm.xlu0 %385, %v296
      %v387 = vpop.permute.xlu0 %386
      %389 = vset.pattern.permute.xlu0 1
      %390 = vperm.xlu0 %389, %v297
      %v391 = vpop.permute.xlu0 %390
      %393 = vset.pattern.permute.xlu0 1
      %394 = vperm.xlu0 %393, %v298
      %v395 = vpop.permute.xlu0 %394
      %397 = vset.pattern.permute.xlu0 1
      %398 = vperm.xlu0 %397, %v299
      %v399 = vpop.permute.xlu0 %398
      %401 = vset.pattern.permute.xlu0 1
      %402 = vperm.xlu0 %401, %v300
      %v403 = vpop.permute.xlu0 %402
      %405 = vset.pattern.permute.xlu0 1
      %406 = vperm.xlu0 %405, %v301
      %v407 = vpop.permute.xlu0 %406
      %409 = vset.pattern.permute.xlu0 1
      %410 = vperm.xlu0 %409, %v302
      %v411 = vpop.permute.xlu0 %410
      %413 = vset.pattern.permute.xlu0 1
      %414 = vperm.xlu0 %413, %v303
      %v415 = vpop.permute.xlu0 %414
      %417 = vset.pattern.permute.xlu0 1
      %418 = vperm.xlu0 %417, %v304
      %v419 = vpop.permute.xlu0 %418
      %421 = vset.pattern.permute.xlu0 1
      %422 = vperm.xlu0 %421, %v305
      %v423 = vpop.permute.xlu0 %422
      %425 = vset.pattern.permute.xlu0 1
      %426 = vperm.xlu0 %425, %v306
      %v427 = vpop.permute.xlu0 %426
      %429 = vset.pattern.permute.xlu0 1
      %430 = vperm.xlu0 %429, %v307
      %v431 = vpop.permute.xlu0 %430
      %v433 = vlaneseq
      %v434 = vshrl.u32 %v433, 7
      %v435 = vsub.s32 1, %v434
      %v436 = vrot.slane %v308, %v435
      %v437 = vmul.f32 %v387, %v436
      %v438 = vmul.f32 %v391, %v436
      %v439 = vmul.f32 %v395, %v436
      %v440 = vmul.f32 %v399, %v436
      %v441 = vmul.f32 %v403, %v436
      %v442 = vmul.f32 %v407, %v436
      %v443 = vmul.f32 %v411, %v436
      %v444 = vmul.f32 %v415, %v436
      %v445 = vmul.f32 %v419, %v436
      %v446 = vmul.f32 %v423, %v436
      %v447 = vmul.f32 %v427, %v436
      %v448 = vmul.f32 %v431, %v436
      %v449 = vadd.f32 %v373, %v437
      %v450 = vadd.f32 %v374, %v438
      %v451 = vadd.f32 %v375, %v439
      %v452 = vadd.f32 %v376, %v440
      %v453 = vadd.f32 %v377, %v441
      %v454 = vadd.f32 %v378, %v442
      %v455 = vadd.f32 %v379, %v443
      %v456 = vadd.f32 %v380, %v444
      %v457 = vadd.f32 %v381, %v445
      %v458 = vadd.f32 %v382, %v446
      %v459 = vadd.f32 %v383, %v447
      %v460 = vadd.f32 %v384, %v448
      %461 = vset.pattern.permute.xlu0 2
      %462 = vperm.xlu0 %461, %v296
      %v463 = vpop.permute.xlu0 %462
      %465 = vset.pattern.permute.xlu0 2
      %466 = vperm.xlu0 %465, %v297
      %v467 = vpop.permute.xlu0 %466
      %469 = vset.pattern.permute.xlu0 2
      %470 = vperm.xlu0 %469, %v298
      %v471 = vpop.permute.xlu0 %470
      %473 = vset.pattern.permute.xlu0 2
      %474 = vperm.xlu0 %473, %v299
      %v475 = vpop.permute.xlu0 %474
      %477 = vset.pattern.permute.xlu0 2
      %478 = vperm.xlu0 %477, %v300
      %v479 = vpop.permute.xlu0 %478
      %481 = vset.pattern.permute.xlu0 2
      %482 = vperm.xlu0 %481, %v301
      %v483 = vpop.permute.xlu0 %482
      %485 = vset.pattern.permute.xlu0 2
      %486 = vperm.xlu0 %485, %v302
      %v487 = vpop.permute.xlu0 %486
      %489 = vset.pattern.permute.xlu0 2
      %490 = vperm.xlu0 %489, %v303
      %v491 = vpop.permute.xlu0 %490
      %493 = vset.pattern.permute.xlu0 2
      %494 = vperm.xlu0 %493, %v304
      %v495 = vpop.permute.xlu0 %494
      %497 = vset.pattern.permute.xlu0 2
      %498 = vperm.xlu0 %497, %v305
      %v499 = vpop.permute.xlu0 %498
      %501 = vset.pattern.permute.xlu0 2
      %502 = vperm.xlu0 %501, %v306
      %v503 = vpop.permute.xlu0 %502
      %505 = vset.pattern.permute.xlu0 2
      %506 = vperm.xlu0 %505, %v307
      %v507 = vpop.permute.xlu0 %506
      %v509 = vlaneseq
      %v510 = vshrl.u32 %v509, 7
      %v511 = vsub.s32 2, %v510
      %v512 = vrot.slane %v308, %v511
      %v513 = vmul.f32 %v463, %v512
      %v514 = vmul.f32 %v467, %v512
      %v515 = vmul.f32 %v471, %v512
      %v516 = vmul.f32 %v475, %v512
      %v517 = vmul.f32 %v479, %v512
      %v518 = vmul.f32 %v483, %v512
      %v519 = vmul.f32 %v487, %v512
      %v520 = vmul.f32 %v491, %v512
      %v521 = vmul.f32 %v495, %v512
      %v522 = vmul.f32 %v499, %v512
      %v523 = vmul.f32 %v503, %v512
      %v524 = vmul.f32 %v507, %v512
      %v525 = vadd.f32 %v449, %v513
      %v526 = vadd.f32 %v450, %v514
      %v527 = vadd.f32 %v451, %v515
      %v528 = vadd.f32 %v452, %v516
      %v529 = vadd.f32 %v453, %v517
      %v530 = vadd.f32 %v454, %v518
      %v531 = vadd.f32 %v455, %v519
      %v532 = vadd.f32 %v456, %v520
      %v533 = vadd.f32 %v457, %v521
      %v534 = vadd.f32 %v458, %v522
      %v535 = vadd.f32 %v459, %v523
      %v536 = vadd.f32 %v460, %v524
      %v537 = vld [vmem:[%s2] sm:$0x1]
      %v539 = vlaneseq
      %v540 = vshrl.u32 %v539, 7
      %v541 = vsub.s32 0, %v540
      %v542 = vrot.slane %v537, %v541
      %v544 = vadd.f32 %v525, %v542
      %v545 = vadd.f32 %v526, %v542
      %v546 = vadd.f32 %v527, %v542
      %v547 = vadd.f32 %v528, %v542
      %v548 = vadd.f32 %v529, %v542
      %v549 = vadd.f32 %v530, %v542
      %v550 = vadd.f32 %v531, %v542
      %v551 = vadd.f32 %v532, %v542
      %v552 = vadd.f32 %v533, %v542
      %v553 = vadd.f32 %v534, %v542
      %v554 = vadd.f32 %v535, %v542
      %v555 = vadd.f32 %v536, %v542
      %v556 = vmax.f32 %v544, 0.0
      %v557 = vmax.f32 %v545, 0.0
      %v558 = vmax.f32 %v546, 0.0
      %v559 = vmax.f32 %v547, 0.0
      %v560 = vmax.f32 %v548, 0.0
      %v561 = vmax.f32 %v549, 0.0
      %v562 = vmax.f32 %v550, 0.0
      %v563 = vmax.f32 %v551, 0.0
      %v564 = vmax.f32 %v552, 0.0
      %v565 = vmax.f32 %v553, 0.0
      %v566 = vmax.f32 %v554, 0.0
      %v567 = vmax.f32 %v555, 0.0
      %v568 = vpack.c.bf16 %v557, %v556
      %v569 = vpack.c.bf16 %v559, %v558
      %v570 = vpack.c.bf16 %v561, %v560
      %v571 = vpack.c.bf16 %v563, %v562
      %v572 = vpack.c.bf16 %v565, %v564
      %v573 = vpack.c.bf16 %v567, %v566
      %v574 = vld [vmem:[%s3] sm:$0xf]
      %v575 = vld [vmem:[%s3 + $0x4] sm:$0xf]
      %v576 = vld [vmem:[%s3 + $0x8] sm:$0xf]
      %v577 = vld [vmem:[%s3 + $0xc] sm:$0xf]
      %v578 = vld [vmem:[%s3 + $0x10] sm:$0xf]
      %v579 = vld [vmem:[%s3 + $0x14] sm:$0xf]
      %v580 = vld [vmem:[%s3 + $0x18] sm:$0xf]
      %v581 = vld [vmem:[%s3 + $0x1c] sm:$0xf]
      %v582 = vld [vmem:[%s4] sm:$0x1]
      %v584 = vlaneseq
      %v585 = vshrl.u32 %v584, 7
      %v586 = vsub.s32 0, %v585
      %v587 = vrot.slane %v582, %v586
      %v597 = vunpack.c.l.b16 %v574
      %v598 = vunpack.c.l.b16 %v575
      %v599 = vunpack.c.l.b16 %v576
      %v600 = vunpack.c.l.b16 %v577
      %v601 = vunpack.c.l.b16 %v578
      %v602 = vunpack.c.l.b16 %v579
      %v603 = vunpack.c.l.b16 %v580
      %v604 = vunpack.c.l.b16 %v581
      %v605 = vpack.c.b16 %v598, %v597
      %v606 = vpack.c.b16 %v600, %v599
      %v607 = vpack.c.b16 %v602, %v601
      %v608 = vpack.c.b16 %v604, %v603
      %vm613 = vcmask 523264
      %v615 = vsel %vm613, %v568, 0
      %v618 = vsel %vm613, %v569, 0
      %v621 = vsel %vm613, %v570, 0
      %v624 = vsel %vm613, %v571, 0
      %v627 = vsel %vm613, %v572, 0
      %v630 = vsel %vm613, %v573, 0
      %632 = vmatprep.subr.bf16.mxu0 0
      %633 = vmatpush1.bf16.msra.mxu0 %v605
      %634 = vmatprep.subr.bf16.mxu0 0
      %635 = vmatpush1.bf16.msra.mxu0 %v606
      %636 = vmatprep.subr.bf16.mxu0 0
      %637 = vmatpush1.bf16.msra.mxu0 %v607
      %638 = vmatprep.subr.bf16.mxu0 0
      %639 = vmatpush1.bf16.msra.mxu0 %v608
      %640 = vmatprep.subr.bf16.mxu0 0
      %641 = vmatpush1.bf16.msra.mxu0 0
      %642 = vmatprep.subr.bf16.mxu0 0
      %643 = vmatpush1.bf16.msra.mxu0 0
      %644 = vmatprep.subr.bf16.mxu0 0
      %645 = vmatpush1.bf16.msra.mxu0 0
      %646 = vmatprep.subr.bf16.mxu0 0
      %647 = vmatpush1.bf16.msra.mxu0 0
      %648 = vmatprep.subr.bf16.mxu0 0
      %649 = vmatpush1.bf16.msra.mxu0 0
      %650 = vmatprep.subr.bf16.mxu0 0
      %651 = vmatpush1.bf16.msra.mxu0 0
      %652 = vmatprep.subr.bf16.mxu0 0
      %653 = vmatpush1.bf16.msra.mxu0 0
      %654 = vmatprep.subr.bf16.mxu0 0
      %655 = vmatpush1.bf16.msra.mxu0 0
      %656 = vmatprep.subr.bf16.mxu0 0
      %657 = vmatpush1.bf16.msra.mxu0 0
      %658 = vmatprep.subr.bf16.mxu0 0
      %659 = vmatpush1.bf16.msra.mxu0 0
      %660 = vmatprep.subr.bf16.mxu0 0
      %661 = vmatpush1.bf16.msra.mxu0 0
      %662 = vmatprep.subr.bf16.mxu0 0
      %663 = vmatpush1.bf16.msra.mxu0 0
      %664 = vmatprep.mubr.bf16.mxu0 0
      %665 = vmatmul.mubr.bf16.gmra.mrb[0].mxu0 %v615
      %v666 = vpop.f32.mrb[0].mxu0
      %v667 = vadd.f32 %v587, %v666
      %v668 = vpop.f32.mrb[0].mxu0
      %v669 = vpop.f32.mrb[0].mxu0
      %v670 = vadd.f32 %v587, %v669
      %v671 = vpop.f32.mrb[0].mxu0
      %672 = vmatprep.mubr.bf16.mxu0 0
      %673 = vmatmul.mubr.bf16.gmra.mrb[0].mxu0 %v618
      %v674 = vpop.f32.mrb[0].mxu0
      %v675 = vadd.f32 %v587, %v674
      %v676 = vpop.f32.mrb[0].mxu0
      %v677 = vpop.f32.mrb[0].mxu0
      %v678 = vadd.f32 %v587, %v677
      %v679 = vpop.f32.mrb[0].mxu0
      %680 = vmatprep.mubr.bf16.mxu0 0
      %681 = vmatmul.mubr.bf16.gmra.mrb[0].mxu0 %v621
      %v682 = vpop.f32.mrb[0].mxu0
      %v683 = vadd.f32 %v587, %v682
      %v684 = vpop.f32.mrb[0].mxu0
      %v685 = vpop.f32.mrb[0].mxu0
      %v686 = vadd.f32 %v587, %v685
      %v687 = vpop.f32.mrb[0].mxu0
      %688 = vmatprep.mubr.bf16.mxu0 0
      %689 = vmatmul.mubr.bf16.gmra.mrb[0].mxu0 %v624
      %v690 = vpop.f32.mrb[0].mxu0
      %v691 = vadd.f32 %v587, %v690
      %v692 = vpop.f32.mrb[0].mxu0
      %v693 = vpop.f32.mrb[0].mxu0
      %v694 = vadd.f32 %v587, %v693
      %v695 = vpop.f32.mrb[0].mxu0
      %696 = vmatprep.mubr.bf16.mxu0 0
      %697 = vmatmul.mubr.bf16.gmra.mrb[0].mxu0 %v627
      %v698 = vpop.f32.mrb[0].mxu0
      %v699 = vadd.f32 %v587, %v698
      %v700 = vpop.f32.mrb[0].mxu0
      %v701 = vpop.f32.mrb[0].mxu0
      %v702 = vadd.f32 %v587, %v701
      %v703 = vpop.f32.mrb[0].mxu0
      %704 = vmatprep.mubr.bf16.mxu0 0
      %705 = vmatmul.mubr.bf16.gmra.mrb[0].mxu0 %v630
      %v706 = vpop.f32.mrb[0].mxu0
      %v707 = vadd.f32 %v587, %v706
      %v708 = vpop.f32.mrb[0].mxu0
      %v709 = vpop.f32.mrb[0].mxu0
      %v710 = vadd.f32 %v587, %v709
      %v711 = vpop.f32.mrb[0].mxu0
      %712 = vdwg.mxu0
      %v713 = vmax.f32 %v667, 0.0
      %v714 = vmax.f32 %v670, 0.0
      %v715 = vmax.f32 %v675, 0.0
      %v716 = vmax.f32 %v678, 0.0
      %v717 = vmax.f32 %v683, 0.0
      %v718 = vmax.f32 %v686, 0.0
      %v719 = vmax.f32 %v691, 0.0
      %v720 = vmax.f32 %v694, 0.0
      %v721 = vmax.f32 %v699, 0.0
      %v722 = vmax.f32 %v702, 0.0
      %v723 = vmax.f32 %v707, 0.0
      %v724 = vmax.f32 %v710, 0.0
      %v725 = vpack.c.bf16 %v714, %v713
      %v726 = vpack.c.bf16 %v716, %v715
      %v727 = vpack.c.bf16 %v718, %v717
      %v728 = vpack.c.bf16 %v720, %v719
      %v729 = vpack.c.bf16 %v722, %v721
      %v730 = vpack.c.bf16 %v724, %v723
      %v731 = vld [vmem:[%s5] sm:$0xff]
      %v732 = vld [vmem:[%s5 + $0x8] sm:$0xff]
      %v733 = vld [vmem:[%s5 + $0x10] sm:$0xff]
      %v734 = vld [vmem:[%s5 + $0x18] sm:$0xff]
      %v735 = vld [vmem:[%s5 + $0x20] sm:$0xff]
      %v736 = vld [vmem:[%s5 + $0x28] sm:$0xff]
      %v737 = vld [vmem:[%s5 + $0x30] sm:$0xff]
      %v738 = vld [vmem:[%s5 + $0x38] sm:$0xff]
      %v739 = vld [vmem:[%s5 + $0x40] sm:$0xff]
      %v740 = vld [vmem:[%s5 + $0x48] sm:$0xff]
      %v741 = vld [vmem:[%s5 + $0x50] sm:$0xff]
      %v742 = vld [vmem:[%s5 + $0x58] sm:$0xff]
      %v743 = vld [vmem:[%s5 + $0x60] sm:$0xff]
      %v744 = vld [vmem:[%s5 + $0x68] sm:$0xff]
      %v745 = vld [vmem:[%s5 + $0x70] sm:$0xff]
      %v746 = vld [vmem:[%s5 + $0x78] sm:$0xff]
      %v747 = vld [vmem:[%s5 + $0x80] sm:$0xff]
      %v748 = vld [vmem:[%s5 + $0x88] sm:$0xff]
      %v749 = vld [vmem:[%s5 + $0x90] sm:$0xff]
      %v750 = vld [vmem:[%s5 + $0x98] sm:$0xff]
      %v751 = vld [vmem:[%s5 + $0xa0] sm:$0xff]
      %v752 = vld [vmem:[%s5 + $0xa8] sm:$0xff]
      %v753 = vld [vmem:[%s5 + $0xb0] sm:$0xff]
      %v754 = vld [vmem:[%s5 + $0xb8] sm:$0xff]
      %v755 = vld [vmem:[%s5 + $0xc0] sm:$0xff]
      %v756 = vld [vmem:[%s5 + $0xc8] sm:$0xff]
      %v757 = vld [vmem:[%s5 + $0xd0] sm:$0xff]
      %v758 = vld [vmem:[%s5 + $0xd8] sm:$0xff]
      %v759 = vld [vmem:[%s5 + $0xe0] sm:$0xff]
      %v760 = vld [vmem:[%s5 + $0xe8] sm:$0xff]
      %v761 = vld [vmem:[%s5 + $0xf0] sm:$0xff]
      %v762 = vld [vmem:[%s5 + $0xf8] sm:$0xff]
      %v763 = vld [vmem:[%s5 + $0x100] sm:$0xff]
      %v764 = vld [vmem:[%s5 + $0x108] sm:$0xff]
      %v765 = vld [vmem:[%s5 + $0x110] sm:$0xff]
      %v766 = vld [vmem:[%s5 + $0x118] sm:$0xff]
      %v767 = vld [vmem:[%s5 + $0x120] sm:$0xff]
      %v768 = vld [vmem:[%s5 + $0x128] sm:$0xff]
      %v769 = vld [vmem:[%s5 + $0x130] sm:$0xff]
      %v770 = vld [vmem:[%s5 + $0x138] sm:$0xff]
      %v771 = vld [vmem:[%s5 + $0x140] sm:$0xff]
      %v772 = vld [vmem:[%s5 + $0x148] sm:$0xff]
      %v773 = vld [vmem:[%s5 + $0x150] sm:$0xff]
      %v774 = vld [vmem:[%s5 + $0x158] sm:$0xff]
      %v775 = vld [vmem:[%s5 + $0x160] sm:$0xff]
      %v776 = vld [vmem:[%s5 + $0x168] sm:$0xff]
      %v777 = vld [vmem:[%s5 + $0x170] sm:$0xff]
      %v778 = vld [vmem:[%s5 + $0x178] sm:$0xff]
      %v779 = vld [vmem:[%s5 + $0x180] sm:$0xff]
      %v780 = vld [vmem:[%s5 + $0x188] sm:$0xff]
      %v781 = vld [vmem:[%s5 + $0x190] sm:$0xff]
      %v782 = vld [vmem:[%s5 + $0x198] sm:$0xff]
      %v783 = vld [vmem:[%s5 + $0x1a0] sm:$0xff]
      %v784 = vld [vmem:[%s5 + $0x1a8] sm:$0xff]
      %v785 = vld [vmem:[%s5 + $0x1b0] sm:$0xff]
      %v786 = vld [vmem:[%s5 + $0x1b8] sm:$0xff]
      %v787 = vld [vmem:[%s5 + $0x1c0] sm:$0xff]
      %v788 = vld [vmem:[%s5 + $0x1c8] sm:$0xff]
      %v789 = vld [vmem:[%s5 + $0x1d0] sm:$0xff]
      %v790 = vld [vmem:[%s5 + $0x1d8] sm:$0xff]
      %v791 = vld [vmem:[%s5 + $0x1e0] sm:$0xff]
      %v792 = vld [vmem:[%s5 + $0x1e8] sm:$0xff]
      %v793 = vld [vmem:[%s5 + $0x1f0] sm:$0xff]
      %v794 = vld [vmem:[%s5 + $0x1f8] sm:$0xff]
      %v859 = vunpack.c.l.b16 %v731
      %v860 = vunpack.c.h.b16 %v731
      %v861 = vunpack.c.l.b16 %v732
      %v862 = vunpack.c.h.b16 %v732
      %v863 = vunpack.c.l.b16 %v733
      %v864 = vunpack.c.h.b16 %v733
      %v865 = vunpack.c.l.b16 %v734
      %v866 = vunpack.c.h.b16 %v734
      %v867 = vunpack.c.l.b16 %v735
      %v868 = vunpack.c.h.b16 %v735
      %v869 = vunpack.c.l.b16 %v736
      %v870 = vunpack.c.h.b16 %v736
      %v871 = vunpack.c.l.b16 %v737
      %v872 = vunpack.c.h.b16 %v737
      %v873 = vunpack.c.l.b16 %v738
      %v874 = vunpack.c.h.b16 %v738
      %v875 = vunpack.c.l.b16 %v739
      %v876 = vunpack.c.h.b16 %v739
      %v877 = vunpack.c.l.b16 %v740
      %v878 = vunpack.c.h.b16 %v740
      %v879 = vunpack.c.l.b16 %v741
      %v880 = vunpack.c.h.b16 %v741
      %v881 = vunpack.c.l.b16 %v742
      %v882 = vunpack.c.h.b16 %v742
      %v883 = vunpack.c.l.b16 %v743
      %v884 = vunpack.c.h.b16 %v743
      %v885 = vunpack.c.l.b16 %v744
      %v886 = vunpack.c.h.b16 %v744
      %v887 = vunpack.c.l.b16 %v745
      %v888 = vunpack.c.h.b16 %v745
      %v889 = vunpack.c.l.b16 %v746
      %v890 = vunpack.c.h.b16 %v746
      %v891 = vunpack.c.l.b16 %v747
      %v892 = vunpack.c.h.b16 %v747
      %v893 = vunpack.c.l.b16 %v748
      %v894 = vunpack.c.h.b16 %v748
      %v895 = vunpack.c.l.b16 %v749
      %v896 = vunpack.c.h.b16 %v749
      %v897 = vunpack.c.l.b16 %v750
      %v898 = vunpack.c.h.b16 %v750
      %v899 = vunpack.c.l.b16 %v751
      %v900 = vunpack.c.h.b16 %v751
      %v901 = vunpack.c.l.b16 %v752
      %v902 = vunpack.c.h.b16 %v752
      %v903 = vunpack.c.l.b16 %v753
      %v904 = vunpack.c.h.b16 %v753
      %v905 = vunpack.c.l.b16 %v754
      %v906 = vunpack.c.h.b16 %v754
      %v907 = vunpack.c.l.b16 %v755
      %v908 = vunpack.c.h.b16 %v755
      %v909 = vunpack.c.l.b16 %v756
      %v910 = vunpack.c.h.b16 %v756
      %v911 = vunpack.c.l.b16 %v757
      %v912 = vunpack.c.h.b16 %v757
      %v913 = vunpack.c.l.b16 %v758
      %v914 = vunpack.c.h.b16 %v758
      %v915 = vunpack.c.l.b16 %v759
      %v916 = vunpack.c.h.b16 %v759
      %v917 = vunpack.c.l.b16 %v760
      %v918 = vunpack.c.h.b16 %v760
      %v919 = vunpack.c.l.b16 %v761
      %v920 = vunpack.c.h.b16 %v761
      %v921 = vunpack.c.l.b16 %v762
      %v922 = vunpack.c.h.b16 %v762
      %v923 = vunpack.c.l.b16 %v763
      %v924 = vunpack.c.h.b16 %v763
      %v925 = vunpack.c.l.b16 %v764
      %v926 = vunpack.c.h.b16 %v764
      %v927 = vunpack.c.l.b16 %v765
      %v928 = vunpack.c.h.b16 %v765
      %v929 = vunpack.c.l.b16 %v766
      %v930 = vunpack.c.h.b16 %v766
      %v931 = vunpack.c.l.b16 %v767
      %v932 = vunpack.c.h.b16 %v767
      %v933 = vunpack.c.l.b16 %v768
      %v934 = vunpack.c.h.b16 %v768
      %v935 = vunpack.c.l.b16 %v769
      %v936 = vunpack.c.h.b16 %v769
      %v937 = vunpack.c.l.b16 %v770
      %v938 = vunpack.c.h.b16 %v770
      %v939 = vunpack.c.l.b16 %v771
      %v940 = vunpack.c.h.b16 %v771
      %v941 = vunpack.c.l.b16 %v772
      %v942 = vunpack.c.h.b16 %v772
      %v943 = vunpack.c.l.b16 %v773
      %v944 = vunpack.c.h.b16 %v773
      %v945 = vunpack.c.l.b16 %v774
      %v946 = vunpack.c.h.b16 %v774
      %v947 = vunpack.c.l.b16 %v775
      %v948 = vunpack.c.h.b16 %v775
      %v949 = vunpack.c.l.b16 %v776
      %v950 = vunpack.c.h.b16 %v776
      %v951 = vunpack.c.l.b16 %v777
      %v952 = vunpack.c.h.b16 %v777
      %v953 = vunpack.c.l.b16 %v778
      %v954 = vunpack.c.h.b16 %v778
      %v955 = vunpack.c.l.b16 %v779
      %v956 = vunpack.c.h.b16 %v779
      %v957 = vunpack.c.l.b16 %v780
      %v958 = vunpack.c.h.b16 %v780
      %v959 = vunpack.c.l.b16 %v781
      %v960 = vunpack.c.h.b16 %v781
      %v961 = vunpack.c.l.b16 %v782
      %v962 = vunpack.c.h.b16 %v782
      %v963 = vunpack.c.l.b16 %v783
      %v964 = vunpack.c.h.b16 %v783
      %v965 = vunpack.c.l.b16 %v784
      %v966 = vunpack.c.h.b16 %v784
      %v967 = vunpack.c.l.b16 %v785
      %v968 = vunpack.c.h.b16 %v785
      %v969 = vunpack.c.l.b16 %v786
      %v970 = vunpack.c.h.b16 %v786
      %v971 = vunpack.c.l.b16 %v787
      %v972 = vunpack.c.h.b16 %v787
      %v973 = vunpack.c.l.b16 %v788
      %v974 = vunpack.c.h.b16 %v788
      %v975 = vunpack.c.l.b16 %v789
      %v976 = vunpack.c.h.b16 %v789
      %v977 = vunpack.c.l.b16 %v790
      %v978 = vunpack.c.h.b16 %v790
      %v979 = vunpack.c.l.b16 %v791
      %v980 = vunpack.c.h.b16 %v791
      %v981 = vunpack.c.l.b16 %v792
      %v982 = vunpack.c.h.b16 %v792
      %v983 = vunpack.c.l.b16 %v793
      %v984 = vunpack.c.h.b16 %v793
      %v985 = vunpack.c.l.b16 %v794
      %v986 = vunpack.c.h.b16 %v794
      %v987 = vpack.c.b16 %v867, %v859
      %v988 = vpack.c.b16 %v868, %v860
      %v989 = vpack.c.b16 %v869, %v861
      %v990 = vpack.c.b16 %v870, %v862
      %v991 = vpack.c.b16 %v871, %v863
      %v992 = vpack.c.b16 %v872, %v864
      %v993 = vpack.c.b16 %v873, %v865
      %v994 = vpack.c.b16 %v874, %v866
      %v995 = vpack.c.b16 %v883, %v875
      %v996 = vpack.c.b16 %v884, %v876
      %v997 = vpack.c.b16 %v885, %v877
      %v998 = vpack.c.b16 %v886, %v878
      %v999 = vpack.c.b16 %v887, %v879
      %v1000 = vpack.c.b16 %v888, %v880
      %v1001 = vpack.c.b16 %v889, %v881
      %v1002 = vpack.c.b16 %v890, %v882
      %v1003 = vpack.c.b16 %v899, %v891
      %v1004 = vpack.c.b16 %v900, %v892
      %v1005 = vpack.c.b16 %v901, %v893
      %v1006 = vpack.c.b16 %v902, %v894
      %v1007 = vpack.c.b16 %v903, %v895
      %v1008 = vpack.c.b16 %v904, %v896
      %v1009 = vpack.c.b16 %v905, %v897
      %v1010 = vpack.c.b16 %v906, %v898
      %v1011 = vpack.c.b16 %v915, %v907
      %v1012 = vpack.c.b16 %v916, %v908
      %v1013 = vpack.c.b16 %v917, %v909
      %v1014 = vpack.c.b16 %v918, %v910
      %v1015 = vpack.c.b16 %v919, %v911
      %v1016 = vpack.c.b16 %v920, %v912
      %v1017 = vpack.c.b16 %v921, %v913
      %v1018 = vpack.c.b16 %v922, %v914
      %v1019 = vpack.c.b16 %v931, %v923
      %v1020 = vpack.c.b16 %v932, %v924
      %v1021 = vpack.c.b16 %v933, %v925
      %v1022 = vpack.c.b16 %v934, %v926
      %v1023 = vpack.c.b16 %v935, %v927
      %v1024 = vpack.c.b16 %v936, %v928
      %v1025 = vpack.c.b16 %v937, %v929
      %v1026 = vpack.c.b16 %v938, %v930
      %v1027 = vpack.c.b16 %v947, %v939
      %v1028 = vpack.c.b16 %v948, %v940
      %v1029 = vpack.c.b16 %v949, %v941
      %v1030 = vpack.c.b16 %v950, %v942
      %v1031 = vpack.c.b16 %v951, %v943
      %v1032 = vpack.c.b16 %v952, %v944
      %v1033 = vpack.c.b16 %v953, %v945
      %v1034 = vpack.c.b16 %v954, %v946
      %v1035 = vpack.c.b16 %v963, %v955
      %v1036 = vpack.c.b16 %v964, %v956
      %v1037 = vpack.c.b16 %v965, %v957
      %v1038 = vpack.c.b16 %v966, %v958
      %v1039 = vpack.c.b16 %v967, %v959
      %v1040 = vpack.c.b16 %v968, %v960
      %v1041 = vpack.c.b16 %v969, %v961
      %v1042 = vpack.c.b16 %v970, %v962
      %v1043 = vpack.c.b16 %v979, %v971
      %v1044 = vpack.c.b16 %v980, %v972
      %v1045 = vpack.c.b16 %v981, %v973
      %v1046 = vpack.c.b16 %v982, %v974
      %v1047 = vpack.c.b16 %v983, %v975
      %v1048 = vpack.c.b16 %v984, %v976
      %v1049 = vpack.c.b16 %v985, %v977
      %v1050 = vpack.c.b16 %v986, %v978
      %1115 = vmatprep.subr.bf16.mxu0 %v988
      %1116 = vmatpush1.bf16.msra.mxu0 %v987
      %1117 = vmatprep.subr.bf16.mxu0 %v996
      %1118 = vmatpush1.bf16.msra.mxu0 %v995
      %1119 = vmatprep.subr.bf16.mxu0 %v1004
      %1120 = vmatpush1.bf16.msra.mxu0 %v1003
      %1121 = vmatprep.subr.bf16.mxu0 %v1012
      %1122 = vmatpush1.bf16.msra.mxu0 %v1011
      %1123 = vmatprep.subr.bf16.mxu0 %v1020
      %1124 = vmatpush1.bf16.msra.mxu0 %v1019
      %1125 = vmatprep.subr.bf16.mxu0 %v1028
      %1126 = vmatpush1.bf16.msra.mxu0 %v1027
      %1127 = vmatprep.subr.bf16.mxu0 %v1036
      %1128 = vmatpush1.bf16.msra.mxu0 %v1035
      %1129 = vmatprep.subr.bf16.mxu0 %v1044
      %1130 = vmatpush1.bf16.msra.mxu0 %v1043
      %1131 = vmatprep.subr.bf16.mxu0 0
      %1132 = vmatpush1.bf16.msra.mxu0 0
      %1133 = vmatprep.subr.bf16.mxu0 0
      %1134 = vmatpush1.bf16.msra.mxu0 0
      %1135 = vmatprep.subr.bf16.mxu0 0
      %1136 = vmatpush1.bf16.msra.mxu0 0
      %1137 = vmatprep.subr.bf16.mxu0 0
      %1138 = vmatpush1.bf16.msra.mxu0 0
      %1139 = vmatprep.subr.bf16.mxu0 0
      %1140 = vmatpush1.bf16.msra.mxu0 0
      %1141 = vmatprep.subr.bf16.mxu0 0
      %1142 = vmatpush1.bf16.msra.mxu0 0
      %1143 = vmatprep.subr.bf16.mxu0 0
      %1144 = vmatpush1.bf16.msra.mxu0 0
      %1145 = vmatprep.subr.bf16.mxu0 0
      %1146 = vmatpush1.bf16.msra.mxu0 0
      %1147 = vmatprep.mubr.bf16.mxu0 0
      %1148 = vmatmul.mubr.bf16.gmra.mrb[0].mxu0 %v725
      %v1149 = vpop.f32.mrb[0].mxu0
      %v1150 = vadd.f32 0.0, %v1149
      %v1151 = vpop.f32.mrb[0].mxu0
      %v1152 = vadd.f32 0.0, %v1151
      %v1153 = vpop.f32.mrb[0].mxu0
      %v1154 = vadd.f32 0.0, %v1153
      %v1155 = vpop.f32.mrb[0].mxu0
      %v1156 = vadd.f32 0.0, %v1155
      %1157 = vmatprep.mubr.bf16.mxu0 0
      %1158 = vmatmul.mubr.bf16.gmra.mrb[0].mxu0 %v726
      %v1159 = vpop.f32.mrb[0].mxu0
      %v1160 = vadd.f32 0.0, %v1159
      %v1161 = vpop.f32.mrb[0].mxu0
      %v1162 = vadd.f32 0.0, %v1161
      %v1163 = vpop.f32.mrb[0].mxu0
      %v1164 = vadd.f32 0.0, %v1163
      %v1165 = vpop.f32.mrb[0].mxu0
      %v1166 = vadd.f32 0.0, %v1165
      %1167 = vmatprep.mubr.bf16.mxu0 0
      %1168 = vmatmul.mubr.bf16.gmra.mrb[0].mxu0 %v727
      %v1169 = vpop.f32.mrb[0].mxu0
      %v1170 = vadd.f32 0.0, %v1169
      %v1171 = vpop.f32.mrb[0].mxu0
      %v1172 = vadd.f32 0.0, %v1171
      %v1173 = vpop.f32.mrb[0].mxu0
      %v1174 = vadd.f32 0.0, %v1173
      %v1175 = vpop.f32.mrb[0].mxu0
      %v1176 = vadd.f32 0.0, %v1175
      %1177 = vmatprep.mubr.bf16.mxu0 0
      %1178 = vmatmul.mubr.bf16.gmra.mrb[0].mxu0 %v728
      %v1179 = vpop.f32.mrb[0].mxu0
      %v1180 = vadd.f32 0.0, %v1179
      %v1181 = vpop.f32.mrb[0].mxu0
      %v1182 = vadd.f32 0.0, %v1181
      %v1183 = vpop.f32.mrb[0].mxu0
      %v1184 = vadd.f32 0.0, %v1183
      %v1185 = vpop.f32.mrb[0].mxu0
      %v1186 = vadd.f32 0.0, %v1185
      %1187 = vmatprep.mubr.bf16.mxu0 0
      %1188 = vmatmul.mubr.bf16.gmra.mrb[0].mxu0 %v729
      %v1189 = vpop.f32.mrb[0].mxu0
      %v1190 = vadd.f32 0.0, %v1189
      %v1191 = vpop.f32.mrb[0].mxu0
      %v1192 = vadd.f32 0.0, %v1191
      %v1193 = vpop.f32.mrb[0].mxu0
      %v1194 = vadd.f32 0.0, %v1193
      %v1195 = vpop.f32.mrb[0].mxu0
      %v1196 = vadd.f32 0.0, %v1195
      %1197 = vmatprep.mubr.bf16.mxu0 0
      %1198 = vmatmul.mubr.bf16.gmra.mrb[0].mxu0 %v730
      %v1199 = vpop.f32.mrb[0].mxu0
      %v1200 = vadd.f32 0.0, %v1199
      %v1201 = vpop.f32.mrb[0].mxu0
      %v1202 = vadd.f32 0.0, %v1201
      %v1203 = vpop.f32.mrb[0].mxu0
      %v1204 = vadd.f32 0.0, %v1203
      %v1205 = vpop.f32.mrb[0].mxu0
      %v1206 = vadd.f32 0.0, %v1205
      %1207 = vdwg.mxu0
      %1208 = vmatprep.subr.bf16.mxu0 %v990
      %1209 = vmatpush1.bf16.msra.mxu0 %v989
      %1210 = vmatprep.subr.bf16.mxu0 %v998
      %1211 = vmatpush1.bf16.msra.mxu0 %v997
      %1212 = vmatprep.subr.bf16.mxu0 %v1006
      %1213 = vmatpush1.bf16.msra.mxu0 %v1005
      %1214 = vmatprep.subr.bf16.mxu0 %v1014
      %1215 = vmatpush1.bf16.msra.mxu0 %v1013
      %1216 = vmatprep.subr.bf16.mxu0 %v1022
      %1217 = vmatpush1.bf16.msra.mxu0 %v1021
      %1218 = vmatprep.subr.bf16.mxu0 %v1030
      %1219 = vmatpush1.bf16.msra.mxu0 %v1029
      %1220 = vmatprep.subr.bf16.mxu0 %v1038
      %1221 = vmatpush1.bf16.msra.mxu0 %v1037
      %1222 = vmatprep.subr.bf16.mxu0 %v1046
      %1223 = vmatpush1.bf16.msra.mxu0 %v1045
      %1224 = vmatprep.subr.bf16.mxu0 0
      %1225 = vmatpush1.bf16.msra.mxu0 0
      %1226 = vmatprep.subr.bf16.mxu0 0
      %1227 = vmatpush1.bf16.msra.mxu0 0
      %1228 = vmatprep.subr.bf16.mxu0 0
      %1229 = vmatpush1.bf16.msra.mxu0 0
      %1230 = vmatprep.subr.bf16.mxu0 0
      %1231 = vmatpush1.bf16.msra.mxu0 0
      %1232 = vmatprep.subr.bf16.mxu0 0
      %1233 = vmatpush1.bf16.msra.mxu0 0
      %1234 = vmatprep.subr.bf16.mxu0 0
      %1235 = vmatpush1.bf16.msra.mxu0 0
      %1236 = vmatprep.subr.bf16.mxu0 0
      %1237 = vmatpush1.bf16.msra.mxu0 0
      %1238 = vmatprep.subr.bf16.mxu0 0
      %1239 = vmatpush1.bf16.msra.mxu0 0
      %1240 = vmatprep.mubr.bf16.mxu0 0
      %1241 = vmatmul.mubr.bf16.gmra.mrb[0].mxu0 %v725
      %v1242 = vpop.f32.mrb[0].mxu0
      %v1243 = vadd.f32 0.0, %v1242
      %v1244 = vpop.f32.mrb[0].mxu0
      %v1245 = vadd.f32 0.0, %v1244
      %v1246 = vpop.f32.mrb[0].mxu0
      %v1247 = vadd.f32 0.0, %v1246
      %v1248 = vpop.f32.mrb[0].mxu0
      %v1249 = vadd.f32 0.0, %v1248
      %1250 = vmatprep.mubr.bf16.mxu0 0
      %1251 = vmatmul.mubr.bf16.gmra.mrb[0].mxu0 %v726
      %v1252 = vpop.f32.mrb[0].mxu0
      %v1253 = vadd.f32 0.0, %v1252
      %v1254 = vpop.f32.mrb[0].mxu0
      %v1255 = vadd.f32 0.0, %v1254
      %v1256 = vpop.f32.mrb[0].mxu0
      %v1257 = vadd.f32 0.0, %v1256
      %v1258 = vpop.f32.mrb[0].mxu0
      %v1259 = vadd.f32 0.0, %v1258
      %1260 = vmatprep.mubr.bf16.mxu0 0
      %1261 = vmatmul.mubr.bf16.gmra.mrb[0].mxu0 %v727
      %v1262 = vpop.f32.mrb[0].mxu0
      %v1263 = vadd.f32 0.0, %v1262
      %v1264 = vpop.f32.mrb[0].mxu0
      %v1265 = vadd.f32 0.0, %v1264
      %v1266 = vpop.f32.mrb[0].mxu0
      %v1267 = vadd.f32 0.0, %v1266
      %v1268 = vpop.f32.mrb[0].mxu0
      %v1269 = vadd.f32 0.0, %v1268
      %1270 = vmatprep.mubr.bf16.mxu0 0
      %1271 = vmatmul.mubr.bf16.gmra.mrb[0].mxu0 %v728
      %v1272 = vpop.f32.mrb[0].mxu0
      %v1273 = vadd.f32 0.0, %v1272
      %v1274 = vpop.f32.mrb[0].mxu0
      %v1275 = vadd.f32 0.0, %v1274
      %v1276 = vpop.f32.mrb[0].mxu0
      %v1277 = vadd.f32 0.0, %v1276
      %v1278 = vpop.f32.mrb[0].mxu0
      %v1279 = vadd.f32 0.0, %v1278
      %1280 = vmatprep.mubr.bf16.mxu0 0
      %1281 = vmatmul.mubr.bf16.gmra.mrb[0].mxu0 %v729
      %v1282 = vpop.f32.mrb[0].mxu0
      %v1283 = vadd.f32 0.0, %v1282
      %v1284 = vpop.f32.mrb[0].mxu0
      %v1285 = vadd.f32 0.0, %v1284
      %v1286 = vpop.f32.mrb[0].mxu0
      %v1287 = vadd.f32 0.0, %v1286
      %v1288 = vpop.f32.mrb[0].mxu0
      %v1289 = vadd.f32 0.0, %v1288
      %1290 = vmatprep.mubr.bf16.mxu0 0
      %1291 = vmatmul.mubr.bf16.gmra.mrb[0].mxu0 %v730
      %v1292 = vpop.f32.mrb[0].mxu0
      %v1293 = vadd.f32 0.0, %v1292
      %v1294 = vpop.f32.mrb[0].mxu0
      %v1295 = vadd.f32 0.0, %v1294
      %v1296 = vpop.f32.mrb[0].mxu0
      %v1297 = vadd.f32 0.0, %v1296
      %v1298 = vpop.f32.mrb[0].mxu0
      %v1299 = vadd.f32 0.0, %v1298
      %1300 = vdwg.mxu0
      %1301 = vmatprep.subr.bf16.mxu0 %v992
      %1302 = vmatpush1.bf16.msra.mxu0 %v991
      %1303 = vmatprep.subr.bf16.mxu0 %v1000
      %1304 = vmatpush1.bf16.msra.mxu0 %v999
      %1305 = vmatprep.subr.bf16.mxu0 %v1008
      %1306 = vmatpush1.bf16.msra.mxu0 %v1007
      %1307 = vmatprep.subr.bf16.mxu0 %v1016
      %1308 = vmatpush1.bf16.msra.mxu0 %v1015
      %1309 = vmatprep.subr.bf16.mxu0 %v1024
      %1310 = vmatpush1.bf16.msra.mxu0 %v1023
      %1311 = vmatprep.subr.bf16.mxu0 %v1032
      %1312 = vmatpush1.bf16.msra.mxu0 %v1031
      %1313 = vmatprep.subr.bf16.mxu0 %v1040
      %1314 = vmatpush1.bf16.msra.mxu0 %v1039
      %1315 = vmatprep.subr.bf16.mxu0 %v1048
      %1316 = vmatpush1.bf16.msra.mxu0 %v1047
      %1317 = vmatprep.subr.bf16.mxu0 0
      %1318 = vmatpush1.bf16.msra.mxu0 0
      %1319 = vmatprep.subr.bf16.mxu0 0
      %1320 = vmatpush1.bf16.msra.mxu0 0
      %1321 = vmatprep.subr.bf16.mxu0 0
      %1322 = vmatpush1.bf16.msra.mxu0 0
      %1323 = vmatprep.subr.bf16.mxu0 0
      %1324 = vmatpush1.bf16.msra.mxu0 0
      %1325 = vmatprep.subr.bf16.mxu0 0
      %1326 = vmatpush1.bf16.msra.mxu0 0
      %1327 = vmatprep.subr.bf16.mxu0 0
      %1328 = vmatpush1.bf16.msra.mxu0 0
      %1329 = vmatprep.subr.bf16.mxu0 0
      %1330 = vmatpush1.bf16.msra.mxu0 0
      %1331 = vmatprep.subr.bf16.mxu0 0
      %1332 = vmatpush1.bf16.msra.mxu0 0
      %1333 = vmatprep.mubr.bf16.mxu0 0
      %1334 = vmatmul.mubr.bf16.gmra.mrb[0].mxu0 %v725
      %v1335 = vpop.f32.mrb[0].mxu0
      %v1336 = vadd.f32 0.0, %v1335
      %v1337 = vpop.f32.mrb[0].mxu0
      %v1338 = vadd.f32 0.0, %v1337
      %v1339 = vpop.f32.mrb[0].mxu0
      %v1340 = vadd.f32 0.0, %v1339
      %v1341 = vpop.f32.mrb[0].mxu0
      %v1342 = vadd.f32 0.0, %v1341
      %1343 = vmatprep.mubr.bf16.mxu0 0
      %1344 = vmatmul.mubr.bf16.gmra.mrb[0].mxu0 %v726
      %v1345 = vpop.f32.mrb[0].mxu0
      %v1346 = vadd.f32 0.0, %v1345
      %v1347 = vpop.f32.mrb[0].mxu0
      %v1348 = vadd.f32 0.0, %v1347
      %v1349 = vpop.f32.mrb[0].mxu0
      %v1350 = vadd.f32 0.0, %v1349
      %v1351 = vpop.f32.mrb[0].mxu0
      %v1352 = vadd.f32 0.0, %v1351
      %1353 = vmatprep.mubr.bf16.mxu0 0
      %1354 = vmatmul.mubr.bf16.gmra.mrb[0].mxu0 %v727
      %v1355 = vpop.f32.mrb[0].mxu0
      %v1356 = vadd.f32 0.0, %v1355
      %v1357 = vpop.f32.mrb[0].mxu0
      %v1358 = vadd.f32 0.0, %v1357
      %v1359 = vpop.f32.mrb[0].mxu0
      %v1360 = vadd.f32 0.0, %v1359
      %v1361 = vpop.f32.mrb[0].mxu0
      %v1362 = vadd.f32 0.0, %v1361
      %1363 = vmatprep.mubr.bf16.mxu0 0
      %1364 = vmatmul.mubr.bf16.gmra.mrb[0].mxu0 %v728
      %v1365 = vpop.f32.mrb[0].mxu0
      %v1366 = vadd.f32 0.0, %v1365
      %v1367 = vpop.f32.mrb[0].mxu0
      %v1368 = vadd.f32 0.0, %v1367
      %v1369 = vpop.f32.mrb[0].mxu0
      %v1370 = vadd.f32 0.0, %v1369
      %v1371 = vpop.f32.mrb[0].mxu0
      %v1372 = vadd.f32 0.0, %v1371
      %1373 = vmatprep.mubr.bf16.mxu0 0
      %1374 = vmatmul.mubr.bf16.gmra.mrb[0].mxu0 %v729
      %v1375 = vpop.f32.mrb[0].mxu0
      %v1376 = vadd.f32 0.0, %v1375
      %v1377 = vpop.f32.mrb[0].mxu0
      %v1378 = vadd.f32 0.0, %v1377
      %v1379 = vpop.f32.mrb[0].mxu0
      %v1380 = vadd.f32 0.0, %v1379
      %v1381 = vpop.f32.mrb[0].mxu0
      %v1382 = vadd.f32 0.0, %v1381
      %1383 = vmatprep.mubr.bf16.mxu0 0
      %1384 = vmatmul.mubr.bf16.gmra.mrb[0].mxu0 %v730
      %v1385 = vpop.f32.mrb[0].mxu0
      %v1386 = vadd.f32 0.0, %v1385
      %v1387 = vpop.f32.mrb[0].mxu0
      %v1388 = vadd.f32 0.0, %v1387
      %v1389 = vpop.f32.mrb[0].mxu0
      %v1390 = vadd.f32 0.0, %v1389
      %v1391 = vpop.f32.mrb[0].mxu0
      %v1392 = vadd.f32 0.0, %v1391
      %1393 = vdwg.mxu0
      %1394 = vmatprep.subr.bf16.mxu0 %v994
      %1395 = vmatpush1.bf16.msra.mxu0 %v993
      %1396 = vmatprep.subr.bf16.mxu0 %v1002
      %1397 = vmatpush1.bf16.msra.mxu0 %v1001
      %1398 = vmatprep.subr.bf16.mxu0 %v1010
      %1399 = vmatpush1.bf16.msra.mxu0 %v1009
      %1400 = vmatprep.subr.bf16.mxu0 %v1018
      %1401 = vmatpush1.bf16.msra.mxu0 %v1017
      %1402 = vmatprep.subr.bf16.mxu0 %v1026
      %1403 = vmatpush1.bf16.msra.mxu0 %v1025
      %1404 = vmatprep.subr.bf16.mxu0 %v1034
      %1405 = vmatpush1.bf16.msra.mxu0 %v1033
      %1406 = vmatprep.subr.bf16.mxu0 %v1042
      %1407 = vmatpush1.bf16.msra.mxu0 %v1041
      %1408 = vmatprep.subr.bf16.mxu0 %v1050
      %1409 = vmatpush1.bf16.msra.mxu0 %v1049
      %1410 = vmatprep.subr.bf16.mxu0 0
      %1411 = vmatpush1.bf16.msra.mxu0 0
      %1412 = vmatprep.subr.bf16.mxu0 0
      %1413 = vmatpush1.bf16.msra.mxu0 0
      %1414 = vmatprep.subr.bf16.mxu0 0
      %1415 = vmatpush1.bf16.msra.mxu0 0
      %1416 = vmatprep.subr.bf16.mxu0 0
      %1417 = vmatpush1.bf16.msra.mxu0 0
      %1418 = vmatprep.subr.bf16.mxu0 0
      %1419 = vmatpush1.bf16.msra.mxu0 0
      %1420 = vmatprep.subr.bf16.mxu0 0
      %1421 = vmatpush1.bf16.msra.mxu0 0
      %1422 = vmatprep.subr.bf16.mxu0 0
      %1423 = vmatpush1.bf16.msra.mxu0 0
      %1424 = vmatprep.subr.bf16.mxu0 0
      %1425 = vmatpush1.bf16.msra.mxu0 0
      %1426 = vmatprep.mubr.bf16.mxu0 0
      %1427 = vmatmul.mubr.bf16.gmra.mrb[0].mxu0 %v725
      %v1428 = vpop.f32.mrb[0].mxu0
      %v1429 = vadd.f32 0.0, %v1428
      %v1430 = vpop.f32.mrb[0].mxu0
      %v1431 = vadd.f32 0.0, %v1430
      %v1432 = vpop.f32.mrb[0].mxu0
      %v1433 = vadd.f32 0.0, %v1432
      %v1434 = vpop.f32.mrb[0].mxu0
      %v1435 = vadd.f32 0.0, %v1434
      %1436 = vmatprep.mubr.bf16.mxu0 0
      %1437 = vmatmul.mubr.bf16.gmra.mrb[0].mxu0 %v726
      %v1438 = vpop.f32.mrb[0].mxu0
      %v1439 = vadd.f32 0.0, %v1438
      %v1440 = vpop.f32.mrb[0].mxu0
      %v1441 = vadd.f32 0.0, %v1440
      %v1442 = vpop.f32.mrb[0].mxu0
      %v1443 = vadd.f32 0.0, %v1442
      %v1444 = vpop.f32.mrb[0].mxu0
      %v1445 = vadd.f32 0.0, %v1444
      %1446 = vmatprep.mubr.bf16.mxu0 0
      %1447 = vmatmul.mubr.bf16.gmra.mrb[0].mxu0 %v727
      %v1448 = vpop.f32.mrb[0].mxu0
      %v1449 = vadd.f32 0.0, %v1448
      %v1450 = vpop.f32.mrb[0].mxu0
      %v1451 = vadd.f32 0.0, %v1450
      %v1452 = vpop.f32.mrb[0].mxu0
      %v1453 = vadd.f32 0.0, %v1452
      %v1454 = vpop.f32.mrb[0].mxu0
      %v1455 = vadd.f32 0.0, %v1454
      %1456 = vmatprep.mubr.bf16.mxu0 0
      %1457 = vmatmul.mubr.bf16.gmra.mrb[0].mxu0 %v728
      %v1458 = vpop.f32.mrb[0].mxu0
      %v1459 = vadd.f32 0.0, %v1458
      %v1460 = vpop.f32.mrb[0].mxu0
      %v1461 = vadd.f32 0.0, %v1460
      %v1462 = vpop.f32.mrb[0].mxu0
      %v1463 = vadd.f32 0.0, %v1462
      %v1464 = vpop.f32.mrb[0].mxu0
      %v1465 = vadd.f32 0.0, %v1464
      %1466 = vmatprep.mubr.bf16.mxu0 0
      %1467 = vmatmul.mubr.bf16.gmra.mrb[0].mxu0 %v729
      %v1468 = vpop.f32.mrb[0].mxu0
      %v1469 = vadd.f32 0.0, %v1468
      %v1470 = vpop.f32.mrb[0].mxu0
      %v1471 = vadd.f32 0.0, %v1470
      %v1472 = vpop.f32.mrb[0].mxu0
      %v1473 = vadd.f32 0.0, %v1472
      %v1474 = vpop.f32.mrb[0].mxu0
      %v1475 = vadd.f32 0.0, %v1474
      %1476 = vmatprep.mubr.bf16.mxu0 0
      %1477 = vmatmul.mubr.bf16.gmra.mrb[0].mxu0 %v730
      %v1478 = vpop.f32.mrb[0].mxu0
      %v1479 = vadd.f32 0.0, %v1478
      %v1480 = vpop.f32.mrb[0].mxu0
      %v1481 = vadd.f32 0.0, %v1480
      %v1482 = vpop.f32.mrb[0].mxu0
      %v1483 = vadd.f32 0.0, %v1482
      %v1484 = vpop.f32.mrb[0].mxu0
      %v1485 = vadd.f32 0.0, %v1484
      %1486 = vdwg.mxu0
      %v1487 = vlaneseq
      %v1488 = vshrl.u32 %v1487, 7
      %v1489 = vadd.s32 %v1488, 8
      %v1490 = vadd.s32 %v1488, 16
      %v1491 = vadd.s32 %v1488, 24
      %v1492 = vadd.s32 %v1488, 32
      %v1493 = vadd.s32 %v1488, 40
      %v1494 = vadd.s32 %v1488, 48
      %v1495 = vadd.s32 %v1488, 56
      %v1496 = vadd.s32 %v1488, 64
      %v1497 = vadd.s32 %v1488, 72
      %v1498 = vadd.s32 %v1488, 80
      %v1499 = vadd.s32 %v1488, 88
      %p1500 = scmp.ne.s32.totalorder %s22, 2
      %vm1501 = vcmp.lt.s32.totalorder %v1488, 58
      %vm1502 = vcmp.lt.s32.totalorder %v1489, 58
      %vm1503 = vcmp.lt.s32.totalorder %v1490, 58
      %vm1504 = vcmp.lt.s32.totalorder %v1491, 58
      %vm1505 = vcmp.lt.s32.totalorder %v1492, 58
      %vm1506 = vcmp.lt.s32.totalorder %v1493, 58
      %vm1507 = vcmp.lt.s32.totalorder %v1494, 58
      %vm1508 = vcmp.lt.s32.totalorder %v1495, 58
      %vm1509 = vcmp.lt.s32.totalorder %v1496, 58
      %vm1510 = vcmp.lt.s32.totalorder %v1497, 58
      %vm1511 = vcmp.lt.s32.totalorder %v1498, 58
      %vm1512 = vcmp.lt.s32.totalorder %v1499, 58
      %s1513 = scalar_select %p1500, 1, 0
      %v1514 = vstv %s1513
      %vm1515 = vcmp.eq.s32.totalorder %v1514, 1
      %vm1516 = vmor %vm1515, %vm1501
      %vm1517 = vmor %vm1515, %vm1502
      %vm1518 = vmor %vm1515, %vm1503
      %vm1519 = vmor %vm1515, %vm1504
      %vm1520 = vmor %vm1515, %vm1505
      %vm1521 = vmor %vm1515, %vm1506
      %vm1522 = vmor %vm1515, %vm1507
      %vm1523 = vmor %vm1515, %vm1508
      %vm1524 = vmor %vm1515, %vm1509
      %vm1525 = vmor %vm1515, %vm1510
      %vm1526 = vmor %vm1515, %vm1511
      %vm1527 = vmor %vm1515, %vm1512
      %v1528 = vsel %vm1516, %v1150, -inf
      %v1529 = vsel %vm1516, %v1152, -inf
      %v1530 = vsel %vm1516, %v1243, -inf
      %v1531 = vsel %vm1516, %v1245, -inf
      %v1532 = vsel %vm1516, %v1336, -inf
      %v1533 = vsel %vm1516, %v1338, -inf
      %v1534 = vsel %vm1516, %v1429, -inf
      %v1535 = vsel %vm1516, %v1431, -inf
      %v1536 = vsel %vm1517, %v1154, -inf
      %v1537 = vsel %vm1517, %v1156, -inf
      %v1538 = vsel %vm1517, %v1247, -inf
      %v1539 = vsel %vm1517, %v1249, -inf
      %v1540 = vsel %vm1517, %v1340, -inf
      %v1541 = vsel %vm1517, %v1342, -inf
      %v1542 = vsel %vm1517, %v1433, -inf
      %v1543 = vsel %vm1517, %v1435, -inf
      %v1544 = vsel %vm1518, %v1160, -inf
      %v1545 = vsel %vm1518, %v1162, -inf
      %v1546 = vsel %vm1518, %v1253, -inf
      %v1547 = vsel %vm1518, %v1255, -inf
      %v1548 = vsel %vm1518, %v1346, -inf
      %v1549 = vsel %vm1518, %v1348, -inf
      %v1550 = vsel %vm1518, %v1439, -inf
      %v1551 = vsel %vm1518, %v1441, -inf
      %v1552 = vsel %vm1519, %v1164, -inf
      %v1553 = vsel %vm1519, %v1166, -inf
      %v1554 = vsel %vm1519, %v1257, -inf
      %v1555 = vsel %vm1519, %v1259, -inf
      %v1556 = vsel %vm1519, %v1350, -inf
      %v1557 = vsel %vm1519, %v1352, -inf
      %v1558 = vsel %vm1519, %v1443, -inf
      %v1559 = vsel %vm1519, %v1445, -inf
      %v1560 = vsel %vm1520, %v1170, -inf
      %v1561 = vsel %vm1520, %v1172, -inf
      %v1562 = vsel %vm1520, %v1263, -inf
      %v1563 = vsel %vm1520, %v1265, -inf
      %v1564 = vsel %vm1520, %v1356, -inf
      %v1565 = vsel %vm1520, %v1358, -inf
      %v1566 = vsel %vm1520, %v1449, -inf
      %v1567 = vsel %vm1520, %v1451, -inf
      %v1568 = vsel %vm1521, %v1174, -inf
      %v1569 = vsel %vm1521, %v1176, -inf
      %v1570 = vsel %vm1521, %v1267, -inf
      %v1571 = vsel %vm1521, %v1269, -inf
      %v1572 = vsel %vm1521, %v1360, -inf
      %v1573 = vsel %vm1521, %v1362, -inf
      %v1574 = vsel %vm1521, %v1453, -inf
      %v1575 = vsel %vm1521, %v1455, -inf
      %v1576 = vsel %vm1522, %v1180, -inf
      %v1577 = vsel %vm1522, %v1182, -inf
      %v1578 = vsel %vm1522, %v1273, -inf
      %v1579 = vsel %vm1522, %v1275, -inf
      %v1580 = vsel %vm1522, %v1366, -inf
      %v1581 = vsel %vm1522, %v1368, -inf
      %v1582 = vsel %vm1522, %v1459, -inf
      %v1583 = vsel %vm1522, %v1461, -inf
      %v1584 = vsel %vm1523, %v1184, -inf
      %v1585 = vsel %vm1523, %v1186, -inf
      %v1586 = vsel %vm1523, %v1277, -inf
      %v1587 = vsel %vm1523, %v1279, -inf
      %v1588 = vsel %vm1523, %v1370, -inf
      %v1589 = vsel %vm1523, %v1372, -inf
      %v1590 = vsel %vm1523, %v1463, -inf
      %v1591 = vsel %vm1523, %v1465, -inf
      %v1592 = vsel %vm1524, %v1190, -inf
      %v1593 = vsel %vm1524, %v1192, -inf
      %v1594 = vsel %vm1524, %v1283, -inf
      %v1595 = vsel %vm1524, %v1285, -inf
      %v1596 = vsel %vm1524, %v1376, -inf
      %v1597 = vsel %vm1524, %v1378, -inf
      %v1598 = vsel %vm1524, %v1469, -inf
      %v1599 = vsel %vm1524, %v1471, -inf
      %v1600 = vsel %vm1525, %v1194, -inf
      %v1601 = vsel %vm1525, %v1196, -inf
      %v1602 = vsel %vm1525, %v1287, -inf
      %v1603 = vsel %vm1525, %v1289, -inf
      %v1604 = vsel %vm1525, %v1380, -inf
      %v1605 = vsel %vm1525, %v1382, -inf
      %v1606 = vsel %vm1525, %v1473, -inf
      %v1607 = vsel %vm1525, %v1475, -inf
      %v1608 = vsel %vm1526, %v1200, -inf
      %v1609 = vsel %vm1526, %v1202, -inf
      %v1610 = vsel %vm1526, %v1293, -inf
      %v1611 = vsel %vm1526, %v1295, -inf
      %v1612 = vsel %vm1526, %v1386, -inf
      %v1613 = vsel %vm1526, %v1388, -inf
      %v1614 = vsel %vm1526, %v1479, -inf
      %v1615 = vsel %vm1526, %v1481, -inf
      %v1616 = vsel %vm1527, %v1204, -inf
      %v1617 = vsel %vm1527, %v1206, -inf
      %v1618 = vsel %vm1527, %v1297, -inf
      %v1619 = vsel %vm1527, %v1299, -inf
      %v1620 = vsel %vm1527, %v1390, -inf
      %v1621 = vsel %vm1527, %v1392, -inf
      %v1622 = vsel %vm1527, %v1483, -inf
      %v1623 = vsel %vm1527, %v1485, -inf
      %p1624 = scmp.eq.s32.totalorder %s22, 0
      // Predicated region
      $region45: #{pointnet_encoder_forward.2} parent=43 // pred_check
        %p1625 = pneg %p1624
      $region46: #{pointnet_encoder_forward.2} parent=43 // pred_check_branch
        %1627 = sbr.rel (%p1625) target = $region48
      $region47: #{pointnet_encoder_forward.2} parent=43 // pred_region
        %1628 = vst [vmem:[#allocation2] sm:$0xff] -inf
        %1629 = vst [vmem:[#allocation2 + $0x8] sm:$0xff] -inf
        %1630 = vst [vmem:[#allocation2 + $0x10] sm:$0xff] -inf
        %1631 = vst [vmem:[#allocation2 + $0x18] sm:$0xff] -inf
        %1632 = vst [vmem:[#allocation2 + $0x20] sm:$0xff] -inf
        %1633 = vst [vmem:[#allocation2 + $0x28] sm:$0xff] -inf
        %1634 = vst [vmem:[#allocation2 + $0x30] sm:$0xff] -inf
        %1635 = vst [vmem:[#allocation2 + $0x38] sm:$0xff] -inf
      $region48: #{pointnet_encoder_forward.2} parent=43 // pred_fallthru
        _
      %v1636 = vmax.f32 %v1528, %v1536
      %v1637 = vmax.f32 %v1636, %v1544
      %v1638 = vmax.f32 %v1637, %v1552
      %v1639 = vmax.f32 %v1638, %v1560
      %v1640 = vmax.f32 %v1639, %v1568
      %v1641 = vmax.f32 %v1640, %v1576
      %v1642 = vmax.f32 %v1641, %v1584
      %v1643 = vmax.f32 %v1642, %v1592
      %v1644 = vmax.f32 %v1643, %v1600
      %v1645 = vmax.f32 %v1644, %v1608
      %v1646 = vmax.f32 %v1645, %v1616
      %v1647 = vmax.f32 %v1529, %v1537
      %v1648 = vmax.f32 %v1647, %v1545
      %v1649 = vmax.f32 %v1648, %v1553
      %v1650 = vmax.f32 %v1649, %v1561
      %v1651 = vmax.f32 %v1650, %v1569
      %v1652 = vmax.f32 %v1651, %v1577
      %v1653 = vmax.f32 %v1652, %v1585
      %v1654 = vmax.f32 %v1653, %v1593
      %v1655 = vmax.f32 %v1654, %v1601
      %v1656 = vmax.f32 %v1655, %v1609
      %v1657 = vmax.f32 %v1656, %v1617
      %v1658 = vmax.f32 %v1530, %v1538
      %v1659 = vmax.f32 %v1658, %v1546
      %v1660 = vmax.f32 %v1659, %v1554
      %v1661 = vmax.f32 %v1660, %v1562
      %v1662 = vmax.f32 %v1661, %v1570
      %v1663 = vmax.f32 %v1662, %v1578
      %v1664 = vmax.f32 %v1663, %v1586
      %v1665 = vmax.f32 %v1664, %v1594
      %v1666 = vmax.f32 %v1665, %v1602
      %v1667 = vmax.f32 %v1666, %v1610
      %v1668 = vmax.f32 %v1667, %v1618
      %v1669 = vmax.f32 %v1531, %v1539
      %v1670 = vmax.f32 %v1669, %v1547
      %v1671 = vmax.f32 %v1670, %v1555
      %v1672 = vmax.f32 %v1671, %v1563
      %v1673 = vmax.f32 %v1672, %v1571
      %v1674 = vmax.f32 %v1673, %v1579
      %v1675 = vmax.f32 %v1674, %v1587
      %v1676 = vmax.f32 %v1675, %v1595
      %v1677 = vmax.f32 %v1676, %v1603
      %v1678 = vmax.f32 %v1677, %v1611
      %v1679 = vmax.f32 %v1678, %v1619
      %v1680 = vmax.f32 %v1532, %v1540
      %v1681 = vmax.f32 %v1680, %v1548
      %v1682 = vmax.f32 %v1681, %v1556
      %v1683 = vmax.f32 %v1682, %v1564
      %v1684 = vmax.f32 %v1683, %v1572
      %v1685 = vmax.f32 %v1684, %v1580
      %v1686 = vmax.f32 %v1685, %v1588
      %v1687 = vmax.f32 %v1686, %v1596
      %v1688 = vmax.f32 %v1687, %v1604
      %v1689 = vmax.f32 %v1688, %v1612
      %v1690 = vmax.f32 %v1689, %v1620
      %v1691 = vmax.f32 %v1533, %v1541
      %v1692 = vmax.f32 %v1691, %v1549
      %v1693 = vmax.f32 %v1692, %v1557
      %v1694 = vmax.f32 %v1693, %v1565
      %v1695 = vmax.f32 %v1694, %v1573
      %v1696 = vmax.f32 %v1695, %v1581
      %v1697 = vmax.f32 %v1696, %v1589
      %v1698 = vmax.f32 %v1697, %v1597
      %v1699 = vmax.f32 %v1698, %v1605
      %v1700 = vmax.f32 %v1699, %v1613
      %v1701 = vmax.f32 %v1700, %v1621
      %v1702 = vmax.f32 %v1534, %v1542
      %v1703 = vmax.f32 %v1702, %v1550
      %v1704 = vmax.f32 %v1703, %v1558
      %v1705 = vmax.f32 %v1704, %v1566
      %v1706 = vmax.f32 %v1705, %v1574
      %v1707 = vmax.f32 %v1706, %v1582
      %v1708 = vmax.f32 %v1707, %v1590
      %v1709 = vmax.f32 %v1708, %v1598
      %v1710 = vmax.f32 %v1709, %v1606
      %v1711 = vmax.f32 %v1710, %v1614
      %v1712 = vmax.f32 %v1711, %v1622
      %v1713 = vmax.f32 %v1535, %v1543
      %v1714 = vmax.f32 %v1713, %v1551
      %v1715 = vmax.f32 %v1714, %v1559
      %v1716 = vmax.f32 %v1715, %v1567
      %v1717 = vmax.f32 %v1716, %v1575
      %v1718 = vmax.f32 %v1717, %v1583
      %v1719 = vmax.f32 %v1718, %v1591
      %v1720 = vmax.f32 %v1719, %v1599
      %v1721 = vmax.f32 %v1720, %v1607
      %v1722 = vmax.f32 %v1721, %v1615
      %v1723 = vmax.f32 %v1722, %v1623
      %v1724 = vld [vmem:[#allocation2] sm:$0xff]
      %v1725 = vld [vmem:[#allocation2 + $0x8] sm:$0xff]
      %v1726 = vld [vmem:[#allocation2 + $0x10] sm:$0xff]
      %v1727 = vld [vmem:[#allocation2 + $0x18] sm:$0xff]
      %v1728 = vld [vmem:[#allocation2 + $0x20] sm:$0xff]
      %v1729 = vld [vmem:[#allocation2 + $0x28] sm:$0xff]
      %v1730 = vld [vmem:[#allocation2 + $0x30] sm:$0xff]
      %v1731 = vld [vmem:[#allocation2 + $0x38] sm:$0xff]
      %v1732 = vmax.f32 %v1724, %v1646
      %v1733 = vmax.f32 %v1725, %v1657
      %v1734 = vmax.f32 %v1726, %v1668
      %v1735 = vmax.f32 %v1727, %v1679
      %v1736 = vmax.f32 %v1728, %v1690
      %v1737 = vmax.f32 %v1729, %v1701
      %v1738 = vmax.f32 %v1730, %v1712
      %v1739 = vmax.f32 %v1731, %v1723
      %1740 = vst [vmem:[#allocation2] sm:$0xff] %v1732
      %1741 = vst [vmem:[#allocation2 + $0x8] sm:$0xff] %v1733
      %1742 = vst [vmem:[#allocation2 + $0x10] sm:$0xff] %v1734
      %1743 = vst [vmem:[#allocation2 + $0x18] sm:$0xff] %v1735
      %1744 = vst [vmem:[#allocation2 + $0x20] sm:$0xff] %v1736
      %1745 = vst [vmem:[#allocation2 + $0x28] sm:$0xff] %v1737
      %1746 = vst [vmem:[#allocation2 + $0x30] sm:$0xff] %v1738
      %1747 = vst [vmem:[#allocation2 + $0x38] sm:$0xff] %v1739
      %p1748 = scmp.eq.s32.totalorder %s22, 2
      // Predicated region
      $region49: #{pointnet_encoder_forward.2} parent=43 // pred_check
        %p1749 = pneg %p1748
      $region50: #{pointnet_encoder_forward.2} parent=43 // pred_check_branch
        %1751 = sbr.rel (%p1749) target = $region52
      $region51: #{pointnet_encoder_forward.2} parent=43 // pred_region
        %v1752 = vld [vmem:[#allocation2] sm:$0xff]
        %v1753 = vld [vmem:[#allocation2 + $0x8] sm:$0xff]
        %v1754 = vld [vmem:[#allocation2 + $0x10] sm:$0xff]
        %v1755 = vld [vmem:[#allocation2 + $0x18] sm:$0xff]
        %v1756 = vld [vmem:[#allocation2 + $0x20] sm:$0xff]
        %v1757 = vld [vmem:[#allocation2 + $0x28] sm:$0xff]
        %v1758 = vld [vmem:[#allocation2 + $0x30] sm:$0xff]
        %v1759 = vld [vmem:[#allocation2 + $0x38] sm:$0xff]
        %v1760 = vrot.slane %v1752, 4
        %v1761 = vmax.f32 %v1752, %v1760
        %v1762 = vrot.slane %v1761, 2
        %v1763 = vmax.f32 %v1761, %v1762
        %v1764 = vrot.slane %v1763, 1
        %v1765 = vmax.f32 %v1763, %v1764
        %v1766 = vrot.slane %v1753, 4
        %v1767 = vmax.f32 %v1753, %v1766
        %v1768 = vrot.slane %v1767, 2
        %v1769 = vmax.f32 %v1767, %v1768
        %v1770 = vrot.slane %v1769, 1
        %v1771 = vmax.f32 %v1769, %v1770
        %v1772 = vrot.slane %v1754, 4
        %v1773 = vmax.f32 %v1754, %v1772
        %v1774 = vrot.slane %v1773, 2
        %v1775 = vmax.f32 %v1773, %v1774
        %v1776 = vrot.slane %v1775, 1
        %v1777 = vmax.f32 %v1775, %v1776
        %v1778 = vrot.slane %v1755, 4
        %v1779 = vmax.f32 %v1755, %v1778
        %v1780 = vrot.slane %v1779, 2
        %v1781 = vmax.f32 %v1779, %v1780
        %v1782 = vrot.slane %v1781, 1
        %v1783 = vmax.f32 %v1781, %v1782
        %v1784 = vrot.slane %v1756, 4
        %v1785 = vmax.f32 %v1756, %v1784
        %v1786 = vrot.slane %v1785, 2
        %v1787 = vmax.f32 %v1785, %v1786
        %v1788 = vrot.slane %v1787, 1
        %v1789 = vmax.f32 %v1787, %v1788
        %v1790 = vrot.slane %v1757, 4
        %v1791 = vmax.f32 %v1757, %v1790
        %v1792 = vrot.slane %v1791, 2
        %v1793 = vmax.f32 %v1791, %v1792
        %v1794 = vrot.slane %v1793, 1
        %v1795 = vmax.f32 %v1793, %v1794
        %v1796 = vrot.slane %v1758, 4
        %v1797 = vmax.f32 %v1758, %v1796
        %v1798 = vrot.slane %v1797, 2
        %v1799 = vmax.f32 %v1797, %v1798
        %v1800 = vrot.slane %v1799, 1
        %v1801 = vmax.f32 %v1799, %v1800
        %v1802 = vrot.slane %v1759, 4
        %v1803 = vmax.f32 %v1759, %v1802
        %v1804 = vrot.slane %v1803, 2
        %v1805 = vmax.f32 %v1803, %v1804
        %v1806 = vrot.slane %v1805, 1
        %v1807 = vmax.f32 %v1805, %v1806
        %v1816 = vcombine.low %v1765, %v1771
        %v1817 = vcombine.low %v1777, %v1783
        %v1818 = vcombine.low %v1789, %v1795
        %v1819 = vcombine.low %v1801, %v1807
        %v1821 = vunpack.c.l.s4 1966171168
        %v1822 = vunpack.c.0.s8 %v1821
        %v1823 = vlaneseq
        %v1824 = vshrl.u32 %v1823, 7
        %v1825 = vsub.s32 %v1822, %v1824
        %v1826 = vrot.slane %v1816, %v1825
        %v1828 = vunpack.c.l.s4 1966171168
        %v1829 = vunpack.c.0.s8 %v1828
        %v1830 = vlaneseq
        %v1831 = vshrl.u32 %v1830, 7
        %v1832 = vsub.s32 %v1829, %v1831
        %v1833 = vrot.slane %v1817, %v1832
        %v1835 = vunpack.c.l.s4 1966171168
        %v1836 = vunpack.c.0.s8 %v1835
        %v1837 = vlaneseq
        %v1838 = vshrl.u32 %v1837, 7
        %v1839 = vsub.s32 %v1836, %v1838
        %v1840 = vrot.slane %v1818, %v1839
        %v1842 = vunpack.c.l.s4 1966171168
        %v1843 = vunpack.c.0.s8 %v1842
        %v1844 = vlaneseq
        %v1845 = vshrl.u32 %v1844, 7
        %v1846 = vsub.s32 %v1843, %v1845
        %v1847 = vrot.slane %v1819, %v1846
        %v1848 = vcombine.low %v1826, %v1833
        %v1849 = vcombine.low %v1840, %v1847
        %v1851 = vunpack.c.l.s4 1966171168
        %v1852 = vunpack.c.0.s8 %v1851
        %v1853 = vlaneseq
        %v1854 = vshrl.u32 %v1853, 7
        %v1855 = vsub.s32 %v1852, %v1854
        %v1856 = vrot.slane %v1848, %v1855
        %v1858 = vunpack.c.l.s4 1966171168
        %v1859 = vunpack.c.0.s8 %v1858
        %v1860 = vlaneseq
        %v1861 = vshrl.u32 %v1860, 7
        %v1862 = vsub.s32 %v1859, %v1861
        %v1863 = vrot.slane %v1849, %v1862
        %v1864 = vcombine.low %v1856, %v1863
        %1866 = vst [vmem:[%s294] sm:$0xff] %v1864
      $region52: #{pointnet_encoder_forward.2} parent=43 // pred_fallthru
        _
      %p1867 = scmp.lt.s32.totalorder %s21, 1
      %s1868 = scalar_select %p1867, %s21, 1
      %s1869 = smul.addr %s1868, 8
      %s1870 = scalar_lea.vmem %s6, %s1869
      // Predicated region
      $region53: #{pointnet_encoder_forward.2} parent=43 // pred_check
        %p1871 = pneg %p185
      $region54: #{pointnet_encoder_forward.2} parent=43 // pred_check_branch
        %1873 = sbr.rel (%p1871) target = $region56
      $region55: #{pointnet_encoder_forward.2} parent=43 // pred_region
        _
      $region56: #{pointnet_encoder_forward.2} parent=43 // pred_fallthru
        _
    $region44: #{pointnet_encoder_forward.2} parent=5 // pred_fallthru
      _
    %p1874 = scmp.le.s32.totalorder 2, %s12
    // Predicated region
    $region57: #{pointnet_encoder_forward.2} parent=5 // pred_check
      %p1875 = pneg %p1874
    $region58: #{pointnet_encoder_forward.2} parent=5 // pred_check_branch
      %1877 = sbr.rel (%p1875) target = $region60
    $region59: #{pointnet_encoder_forward.2} parent=5 // pred_region
      %s1878 = ssub.s32 %s12, 2
      // Predicated region
      $region61: #{pointnet_encoder_forward.2} parent=59 // pred_check
        %p1879 = pneg %p191
      $region62: #{pointnet_encoder_forward.2} parent=59 // pred_check_branch
        %1881 = sbr.rel (%p1879) target = $region64
      $region63: #{pointnet_encoder_forward.2} parent=59 // pred_region
        %p1882 = scmp.lt.s32.totalorder %s23, 1
        %s1883 = scalar_select %p1882, %s23, 1
        %s1884 = smul.addr %s1883, 8
        %s1885 = scalar_lea.vmem %s6, %s1884
      $region64: #{pointnet_encoder_forward.2} parent=59 // pred_fallthru
        _
    $region60: #{pointnet_encoder_forward.2} parent=5 // pred_fallthru
      _
  $region6: #{pointnet_encoder_forward.2} parent=0 // loop_footer
    %s16 = sadd.s32 1, %s12
  $region7: #{pointnet_encoder_forward.2} parent=0 // loop_footer_branch
    %11 = sbr.rel target = $region3
  $region8: #{pointnet_encoder_forward.2} parent=0 // loop_exit
    _

</llo_original>
